<compile_context>
chip_gen: v6e
topology: v6e:2x2x1
jax: 0.10.0
libtpu: 0.0.40
codegen_flags: <defaults>
</compile_context>

<pallas_src>
import functools
import math

import jax
import jax.numpy as jnp
from jax.experimental import pallas as pl
from jax.experimental.pallas import tpu as pltpu


def _fused_extracter_kernel(*refs, layer_cfgs, T, P_max):
    """Runs the whole conv stack for one batch element.

    refs = (x_ref, w_0..w_{L-1}, b_0..b_{L-1}, o_ref, buf0, buf1, im2col)
      x_ref : (C_in0, T)                input, f32
      w_l   : (C_out_l, K_l * C_in_l)   im2col-reshaped weights, bf16
      b_l   : (C_out_l, 1)              biases, f32
      o_ref : (C_out_last, T)           output
      buf0/buf1 : (C_buf, T + 2*P_max)  ping-pong activations, bf16
      im2col    : (R_im, T)             stacked shifted activations, bf16
    """
    L = len(layer_cfgs)
    x_ref = refs[0]
    w_refs = refs[1:1 + L]
    b_refs = refs[1 + L:1 + 2 * L]
    o_ref = refs[1 + 2 * L]
    buf = (refs[2 + 2 * L], refs[3 + 2 * L])
    im_ref = refs[4 + 2 * L]

    # Zero both activation buffers once per grid step.  Halo columns stay zero
    # for every layer because layers only ever write the interior
    # [P_max, P_max + T), so halo reads implement the conv zero-padding.
    buf[0][...] = jnp.zeros_like(buf[0])
    buf[1][...] = jnp.zeros_like(buf[1])

    # Stage the (C_in0, T) input into the interior of buf0 (cast to bf16).
    c_in0 = layer_cfgs[0][0]
    buf[0][0:c_in0, P_max:P_max + T] = x_ref[...].astype(buf[0].dtype)

    src_idx = 0
    for l, (c_in, c_out, K, pad) in enumerate(layer_cfgs):
        src = buf[src_idx]
        base = P_max - pad  # static offset; halo cells are zeros == zero pad

        if c_in % 16 == 0:
            # im2col + single MXU matmul (contraction depth K * c_in).
            # Stores into im_ref are sublane-aligned (c_in multiple of 16 rows
            # of bf16) and full-lane-width.
            for k in range(K):
                im_ref[k * c_in:(k + 1) * c_in, :] = (
                    src[0:c_in, base + k:base + k + T])
            acc = jnp.dot(w_refs[l][...], im_ref[0:K * c_in, :],
                          preferred_element_type=jnp.float32)
        else:
            # Tiny-C_in layer (e.g. first layer, C_in == 1): K*c_in broadcast
            # multiply-adds on the VPU; an MXU matmul here would only have
            # contraction depth c_in.
            w2 = w_refs[l][...].astype(jnp.float32)           # (c_out, K*c_in)
            acc = jnp.zeros((c_out, T), jnp.float32)
            for k in range(K):
                for c in range(c_in):
                    idx = k * c_in + c
                    acc = acc + (
                        w2[:, idx:idx + 1]
                        * src[c:c + 1, base + k:base + k + T].astype(jnp.float32))

        acc = acc + b_refs[l][...]          # bias (f32)
        acc = jnp.maximum(acc, 0.0)         # ReLU

        if l == L - 1:
            o_ref[...] = acc.astype(o_ref.dtype)
        else:
            dst = buf[1 - src_idx]
            dst[0:c_out, P_max:P_max + T] = acc.astype(dst.dtype)
            src_idx = 1 - src_idx


def watermark_extracter_wav_pallas(x, params, layer_cfgs):
    """x: (B, input_channel, T) -> (B, latent_dim, T)."""
    B, C_in0, T = x.shape
    L = len(layer_cfgs)
    assert C_in0 == layer_cfgs[0][0]
    for (c_in, c_out, K, pad) in layer_cfgs:
        assert K == 2 * pad + 1, "layer must be stride-1 length-preserving"

    P_max = max(p for (_, _, _, p) in layer_cfgs)
    C_buf = max(max(ci, co) for (ci, co, _, _) in layer_cfgs)
    C_out_last = layer_cfgs[-1][1]
    T_buf = T + 2 * P_max
    R_im = max(K * ci for (ci, _, K, _) in layer_cfgs)

    # Host-side weight prep: lane-dense im2col layout (C_out, K*C_in), bf16.
    # Row order of the im2col stack is (k, c) -> k*C_in + c, i.e. transpose
    # the (C_out, C_in, K) torch layout to (C_out, K, C_in) before flattening.
    w2ds, biases = [], []
    for (w, b), (c_in, c_out, K, _pad) in zip(params, layer_cfgs):
        w2d = jnp.transpose(w, (0, 2, 1)).reshape(c_out, K * c_in)
        w2ds.append(w2d.astype(jnp.bfloat16))
        biases.append(b.reshape(c_out, 1).astype(jnp.float32))

    kernel = functools.partial(_fused_extracter_kernel,
                               layer_cfgs=tuple(layer_cfgs), T=T, P_max=P_max)

    in_specs = [pl.BlockSpec((None, C_in0, T), lambda bi: (bi, 0, 0))]
    for w2d in w2ds:
        in_specs.append(pl.BlockSpec(w2d.shape, lambda bi: (0, 0)))
    for bv in biases:
        in_specs.append(pl.BlockSpec(bv.shape, lambda bi: (0, 0)))

    return pl.pallas_call(
        kernel,
        out_shape=jax.ShapeDtypeStruct((B, C_out_last, T), x.dtype),
        grid_spec=pltpu.PrefetchScalarGridSpec(
            num_scalar_prefetch=0,
            grid=(B,),
            in_specs=in_specs,
            out_specs=pl.BlockSpec((None, C_out_last, T), lambda bi: (bi, 0, 0)),
            scratch_shapes=[
                pltpu.VMEM((C_buf, T_buf), jnp.bfloat16),   # ping activation
                pltpu.VMEM((C_buf, T_buf), jnp.bfloat16),   # pong activation
                pltpu.VMEM((R_im, T), jnp.bfloat16),        # im2col stack
            ],
        ),
        compiler_params=pltpu.CompilerParams(
            dimension_semantics=("parallel",)),
    )(x, *w2ds, *biases)


# ---------------- parameter construction (deterministic, synthetic) ----------

def make_layer_cfgs(input_channel, latent_dim, n_layers):
    cfgs = [(input_channel, latent_dim, 3, 1)]
    for i in range(n_layers - 2):
        cfgs.append((latent_dim, latent_dim, 2 * i + 3, i + 1))
    cfgs.append((latent_dim, latent_dim, 3, 1))
    return cfgs


def make_params(key, layer_cfgs):
    keys = jax.random.split(key, 2 * len(layer_cfgs))
    params = []
    for li, (c_in, c_out, K, _pad) in enumerate(layer_cfgs):
        bound = 1.0 / math.sqrt(c_in * K)       # nn.Conv1d default init
        w = jax.random.uniform(keys[2 * li], (c_out, c_in, K),
                               jnp.float32, -bound, bound)
        b = jax.random.uniform(keys[2 * li + 1], (c_out,),
                               jnp.float32, -bound, bound)
        params.append((w, b))
    return params


# ---------------- pure-JAX f32 reference (for correctness check) -------------

def watermark_extracter_wav_reference(x, params, layer_cfgs):
    h = x
    for (w, b), (_c_in, _c_out, _K, pad) in zip(params, layer_cfgs):
        h = jax.lax.conv_general_dilated(
            h, w, window_strides=(1,), padding=[(pad, pad)],
            dimension_numbers=("NCH", "OIH", "NCH")) + b[None, :, None]
        h = jnp.maximum(h, 0.0)
    return h


if __name__ == "__main__":
    # Small, forward-consistent shapes: batch=2, input_channel=1, time=128,
    # latent_dim=32, n_layers=4 (out_channel is unused by the module).
    B, T = 2, 128
    input_channel, out_channel, latent_dim, n_layers = 1, 32, 32, 4

    layer_cfgs = make_layer_cfgs(input_channel, latent_dim, n_layers)

    key = jax.random.PRNGKey(0)
    k_params, k_input = jax.random.split(key)
    params = make_params(k_params, layer_cfgs)
    x = jax.random.normal(k_input, (B, input_channel, T), jnp.float32)

    out = jax.block_until_ready(
        watermark_extracter_wav_pallas(x, params, layer_cfgs))
    assert out.shape == (B, latent_dim, T), out.shape

    ref = jax.block_until_ready(
        watermark_extracter_wav_reference(x, params, layer_cfgs))
    # bf16 matmul operands with f32 accumulation vs. a pure-f32 reference.
    max_err = float(jnp.max(jnp.abs(out - ref)))
    assert jnp.allclose(out, ref, rtol=2e-2, atol=2e-2), max_err

    print("KERNEL_OK")
</pallas_src>

<mosaic_0001>
module attributes {stable_mosaic.version = 11 : i64} {
  func.func @_fused_extracter_kernel(%arg0: i32, %arg1: memref<1x1x128xf32, #tpu.memory_space<vmem>>, %arg2: memref<32x3xbf16, #tpu.memory_space<vmem>>, %arg3: memref<32x96xbf16, #tpu.memory_space<vmem>>, %arg4: memref<32x160xbf16, #tpu.memory_space<vmem>>, %arg5: memref<32x96xbf16, #tpu.memory_space<vmem>>, %arg6: memref<32x1xf32, #tpu.memory_space<vmem>>, %arg7: memref<32x1xf32, #tpu.memory_space<vmem>>, %arg8: memref<32x1xf32, #tpu.memory_space<vmem>>, %arg9: memref<32x1xf32, #tpu.memory_space<vmem>>, %arg10: memref<1x32x128xf32, #tpu.memory_space<vmem>>, %arg11: memref<32x132xbf16, #tpu.memory_space<vmem>>, %arg12: memref<32x132xbf16, #tpu.memory_space<vmem>>, %arg13: memref<160x128xbf16, #tpu.memory_space<vmem>>) attributes {dimension_semantics = [#tpu.dimension_semantics<parallel>], iteration_bounds = array<i64: 2>, scalar_prefetch = 0 : i64, scratch_operands = 3 : i64, tpu.core_type = #tpu.core_type<tc>, window_params = [{transform_indices = @transform_0, window_bounds = array<i64: 1, 1, 128>}, {pipeline_mode = #tpu.pipeline_mode<synchronous>, transform_indices = @transform_1, window_bounds = array<i64: 32, 3>}, {pipeline_mode = #tpu.pipeline_mode<synchronous>, transform_indices = @transform_2, window_bounds = array<i64: 32, 96>}, {pipeline_mode = #tpu.pipeline_mode<synchronous>, transform_indices = @transform_3, window_bounds = array<i64: 32, 160>}, {pipeline_mode = #tpu.pipeline_mode<synchronous>, transform_indices = @transform_4, window_bounds = array<i64: 32, 96>}, {pipeline_mode = #tpu.pipeline_mode<synchronous>, transform_indices = @transform_5, window_bounds = array<i64: 32, 1>}, {pipeline_mode = #tpu.pipeline_mode<synchronous>, transform_indices = @transform_6, window_bounds = array<i64: 32, 1>}, {pipeline_mode = #tpu.pipeline_mode<synchronous>, transform_indices = @transform_7, window_bounds = array<i64: 32, 1>}, {pipeline_mode = #tpu.pipeline_mode<synchronous>, transform_indices = @transform_8, window_bounds = array<i64: 32, 1>}, {transform_indices = @transform_9, window_bounds = array<i64: 1, 32, 128>}]} {
    %cst = arith.constant 0.000000e+00 : bf16
    %0 = vector.broadcast %cst : bf16 to vector<32x132xbf16>
    %c0 = arith.constant 0 : index
    %c0_0 = arith.constant 0 : index
    %1 = vector.load %arg11[%c0, %c0_0] : memref<32x132xbf16, #tpu.memory_space<vmem>>, vector<32x132xbf16>
    tpu.vector_store %arg11[%c0, %c0_0], %0 {strides = array<i32>} : memref<32x132xbf16, #tpu.memory_space<vmem>>, vector<32x132xbf16>,
    %cst_1 = arith.constant 0.000000e+00 : bf16
    %2 = vector.broadcast %cst_1 : bf16 to vector<32x132xbf16>
    %c0_2 = arith.constant 0 : index
    %c0_3 = arith.constant 0 : index
    %3 = vector.load %arg12[%c0_2, %c0_3] : memref<32x132xbf16, #tpu.memory_space<vmem>>, vector<32x132xbf16>
    tpu.vector_store %arg12[%c0_2, %c0_3], %2 {strides = array<i32>} : memref<32x132xbf16, #tpu.memory_space<vmem>>, vector<32x132xbf16>,
    %c0_4 = arith.constant 0 : index
    %c0_5 = arith.constant 0 : index
    %c0_6 = arith.constant 0 : index
    %4 = vector.load %arg1[%c0_4, %c0_5, %c0_6] : memref<1x1x128xf32, #tpu.memory_space<vmem>>, vector<1x1x128xf32>
    %5 = vector.shape_cast %4 : vector<1x1x128xf32> to vector<1x128xf32>
    %6 = arith.truncf %5 : vector<1x128xf32> to vector<1x128xbf16>
    %c0_7 = arith.constant 0 : index
    %c2 = arith.constant 2 : index
    %7 = vector.load %arg11[%c0_7, %c2] : memref<32x132xbf16, #tpu.memory_space<vmem>>, vector<1x128xbf16>
    tpu.vector_store %arg11[%c0_7, %c2], %6 {strides = array<i32>} : memref<32x132xbf16, #tpu.memory_space<vmem>>, vector<1x128xbf16>,
    %c0_8 = arith.constant 0 : index
    %c0_9 = arith.constant 0 : index
    %8 = vector.load %arg2[%c0_8, %c0_9] : memref<32x3xbf16, #tpu.memory_space<vmem>>, vector<32x3xbf16>
    %9 = arith.extf %8 : vector<32x3xbf16> to vector<32x3xf32>
    %cst_10 = arith.constant 0.000000e+00 : f32
    %10 = vector.broadcast %cst_10 : f32 to vector<32x128xf32>
    %11 = vector.extract_strided_slice %9 {offsets = [0, 0], sizes = [32, 1], strides = [1, 1]} : vector<32x3xf32> to vector<32x1xf32>
    %c0_11 = arith.constant 0 : index
    %c1 = arith.constant 1 : index
    %12 = vector.load %arg11[%c0_11, %c1] : memref<32x132xbf16, #tpu.memory_space<vmem>>, vector<1x128xbf16>
    %13 = arith.extf %12 : vector<1x128xbf16> to vector<1x128xf32>
    %14 = vector.broadcast %11 : vector<32x1xf32> to vector<32x128xf32>
    %15 = vector.broadcast %13 : vector<1x128xf32> to vector<32x128xf32>
    %16 = arith.mulf %14, %15 : vector<32x128xf32>
    %17 = arith.addf %10, %16 : vector<32x128xf32>
    %18 = vector.extract_strided_slice %9 {offsets = [0, 1], sizes = [32, 1], strides = [1, 1]} : vector<32x3xf32> to vector<32x1xf32>
    %c0_12 = arith.constant 0 : index
    %c2_13 = arith.constant 2 : index
    %19 = vector.load %arg11[%c0_12, %c2_13] : memref<32x132xbf16, #tpu.memory_space<vmem>>, vector<1x128xbf16>
    %20 = arith.extf %19 : vector<1x128xbf16> to vector<1x128xf32>
    %21 = vector.broadcast %18 : vector<32x1xf32> to vector<32x128xf32>
    %22 = vector.broadcast %20 : vector<1x128xf32> to vector<32x128xf32>
    %23 = arith.mulf %21, %22 : vector<32x128xf32>
    %24 = arith.addf %17, %23 : vector<32x128xf32>
    %25 = vector.extract_strided_slice %9 {offsets = [0, 2], sizes = [32, 1], strides = [1, 1]} : vector<32x3xf32> to vector<32x1xf32>
    %c0_14 = arith.constant 0 : index
    %c3 = arith.constant 3 : index
    %26 = vector.load %arg11[%c0_14, %c3] : memref<32x132xbf16, #tpu.memory_space<vmem>>, vector<1x128xbf16>
    %27 = arith.extf %26 : vector<1x128xbf16> to vector<1x128xf32>
    %28 = vector.broadcast %25 : vector<32x1xf32> to vector<32x128xf32>
    %29 = vector.broadcast %27 : vector<1x128xf32> to vector<32x128xf32>
    %30 = arith.mulf %28, %29 : vector<32x128xf32>
    %31 = arith.addf %24, %30 : vector<32x128xf32>
    %c0_15 = arith.constant 0 : index
    %c0_16 = arith.constant 0 : index
    %32 = vector.load %arg6[%c0_15, %c0_16] : memref<32x1xf32, #tpu.memory_space<vmem>>, vector<32x1xf32>
    %33 = vector.broadcast %32 : vector<32x1xf32> to vector<32x128xf32>
    %34 = arith.addf %31, %33 : vector<32x128xf32>
    %cst_17 = arith.constant 0.000000e+00 : f32
    %35 = vector.broadcast %cst_17 : f32 to vector<32x128xf32>
    %36 = arith.maximumf %34, %35 : vector<32x128xf32>
    %37 = arith.truncf %36 : vector<32x128xf32> to vector<32x128xbf16>
    %c0_18 = arith.constant 0 : index
    %c2_19 = arith.constant 2 : index
    %38 = vector.load %arg12[%c0_18, %c2_19] : memref<32x132xbf16, #tpu.memory_space<vmem>>, vector<32x128xbf16>
    tpu.vector_store %arg12[%c0_18, %c2_19], %37 {strides = array<i32>} : memref<32x132xbf16, #tpu.memory_space<vmem>>, vector<32x128xbf16>,
    %c0_20 = arith.constant 0 : index
    %c1_21 = arith.constant 1 : index
    %39 = vector.load %arg12[%c0_20, %c1_21] : memref<32x132xbf16, #tpu.memory_space<vmem>>, vector<32x128xbf16>
    %c0_22 = arith.constant 0 : index
    %c0_23 = arith.constant 0 : index
    %40 = vector.load %arg13[%c0_22, %c0_23] : memref<160x128xbf16, #tpu.memory_space<vmem>>, vector<32x128xbf16>
    tpu.vector_store %arg13[%c0_22, %c0_23], %39 {strides = array<i32>} : memref<160x128xbf16, #tpu.memory_space<vmem>>, vector<32x128xbf16>,
    %c0_24 = arith.constant 0 : index
    %c2_25 = arith.constant 2 : index
    %41 = vector.load %arg12[%c0_24, %c2_25] : memref<32x132xbf16, #tpu.memory_space<vmem>>, vector<32x128xbf16>
    %c32 = arith.constant 32 : index
    %c0_26 = arith.constant 0 : index
    %42 = vector.load %arg13[%c32, %c0_26] : memref<160x128xbf16, #tpu.memory_space<vmem>>, vector<32x128xbf16>
    tpu.vector_store %arg13[%c32, %c0_26], %41 {strides = array<i32>} : memref<160x128xbf16, #tpu.memory_space<vmem>>, vector<32x128xbf16>,
    %c0_27 = arith.constant 0 : index
    %c3_28 = arith.constant 3 : index
    %43 = vector.load %arg12[%c0_27, %c3_28] : memref<32x132xbf16, #tpu.memory_space<vmem>>, vector<32x128xbf16>
    %c64 = arith.constant 64 : index
    %c0_29 = arith.constant 0 : index
    %44 = vector.load %arg13[%c64, %c0_29] : memref<160x128xbf16, #tpu.memory_space<vmem>>, vector<32x128xbf16>
    tpu.vector_store %arg13[%c64, %c0_29], %43 {strides = array<i32>} : memref<160x128xbf16, #tpu.memory_space<vmem>>, vector<32x128xbf16>,
    %c0_30 = arith.constant 0 : index
    %c0_31 = arith.constant 0 : index
    %45 = vector.load %arg3[%c0_30, %c0_31] : memref<32x96xbf16, #tpu.memory_space<vmem>>, vector<32x96xbf16>
    %c0_32 = arith.constant 0 : index
    %c0_33 = arith.constant 0 : index
    %46 = vector.load %arg13[%c0_32, %c0_33] : memref<160x128xbf16, #tpu.memory_space<vmem>>, vector<96x128xbf16>
    %cst_34 = arith.constant dense<0.000000e+00> : vector<32x128xf32>
    %47 = tpu.matmul %45, %46, %cst_34 {dimension_numbers = #tpu.dot_dimension_numbers<[1], [0], [0], [1], [0, 0, 1, 1], [], []>} : vector<32x96xbf16>, vector<96x128xbf16>, vector<32x128xf32> -> vector<32x128xf32>
    %c0_35 = arith.constant 0 : index
    %c0_36 = arith.constant 0 : index
    %48 = vector.load %arg7[%c0_35, %c0_36] : memref<32x1xf32, #tpu.memory_space<vmem>>, vector<32x1xf32>
    %49 = vector.broadcast %48 : vector<32x1xf32> to vector<32x128xf32>
    %50 = arith.addf %47, %49 : vector<32x128xf32>
    %cst_37 = arith.constant 0.000000e+00 : f32
    %51 = vector.broadcast %cst_37 : f32 to vector<32x128xf32>
    %52 = arith.maximumf %50, %51 : vector<32x128xf32>
    %53 = arith.truncf %52 : vector<32x128xf32> to vector<32x128xbf16>
    %c0_38 = arith.constant 0 : index
    %c2_39 = arith.constant 2 : index
    %54 = vector.load %arg11[%c0_38, %c2_39] : memref<32x132xbf16, #tpu.memory_space<vmem>>, vector<32x128xbf16>
    tpu.vector_store %arg11[%c0_38, %c2_39], %53 {strides = array<i32>} : memref<32x132xbf16, #tpu.memory_space<vmem>>, vector<32x128xbf16>,
    %c0_40 = arith.constant 0 : index
    %c0_41 = arith.constant 0 : index
    %55 = vector.load %arg11[%c0_40, %c0_41] : memref<32x132xbf16, #tpu.memory_space<vmem>>, vector<32x128xbf16>
    %c0_42 = arith.constant 0 : index
    %c0_43 = arith.constant 0 : index
    %56 = vector.load %arg13[%c0_42, %c0_43] : memref<160x128xbf16, #tpu.memory_space<vmem>>, vector<32x128xbf16>
    tpu.vector_store %arg13[%c0_42, %c0_43], %55 {strides = array<i32>} : memref<160x128xbf16, #tpu.memory_space<vmem>>, vector<32x128xbf16>,
    %c0_44 = arith.constant 0 : index
    %c1_45 = arith.constant 1 : index
    %57 = vector.load %arg11[%c0_44, %c1_45] : memref<32x132xbf16, #tpu.memory_space<vmem>>, vector<32x128xbf16>
    %c32_46 = arith.constant 32 : index
    %c0_47 = arith.constant 0 : index
    %58 = vector.load %arg13[%c32_46, %c0_47] : memref<160x128xbf16, #tpu.memory_space<vmem>>, vector<32x128xbf16>
    tpu.vector_store %arg13[%c32_46, %c0_47], %57 {strides = array<i32>} : memref<160x128xbf16, #tpu.memory_space<vmem>>, vector<32x128xbf16>,
    %c0_48 = arith.constant 0 : index
    %c2_49 = arith.constant 2 : index
    %59 = vector.load %arg11[%c0_48, %c2_49] : memref<32x132xbf16, #tpu.memory_space<vmem>>, vector<32x128xbf16>
    %c64_50 = arith.constant 64 : index
    %c0_51 = arith.constant 0 : index
    %60 = vector.load %arg13[%c64_50, %c0_51] : memref<160x128xbf16, #tpu.memory_space<vmem>>, vector<32x128xbf16>
    tpu.vector_store %arg13[%c64_50, %c0_51], %59 {strides = array<i32>} : memref<160x128xbf16, #tpu.memory_space<vmem>>, vector<32x128xbf16>,
    %c0_52 = arith.constant 0 : index
    %c3_53 = arith.constant 3 : index
    %61 = vector.load %arg11[%c0_52, %c3_53] : memref<32x132xbf16, #tpu.memory_space<vmem>>, vector<32x128xbf16>
    %c96 = arith.constant 96 : index
    %c0_54 = arith.constant 0 : index
    %62 = vector.load %arg13[%c96, %c0_54] : memref<160x128xbf16, #tpu.memory_space<vmem>>, vector<32x128xbf16>
    tpu.vector_store %arg13[%c96, %c0_54], %61 {strides = array<i32>} : memref<160x128xbf16, #tpu.memory_space<vmem>>, vector<32x128xbf16>,
    %c0_55 = arith.constant 0 : index
    %c4 = arith.constant 4 : index
    %63 = vector.load %arg11[%c0_55, %c4] : memref<32x132xbf16, #tpu.memory_space<vmem>>, vector<32x128xbf16>
    %c128 = arith.constant 128 : index
    %c0_56 = arith.constant 0 : index
    %64 = vector.load %arg13[%c128, %c0_56] : memref<160x128xbf16, #tpu.memory_space<vmem>>, vector<32x128xbf16>
    tpu.vector_store %arg13[%c128, %c0_56], %63 {strides = array<i32>} : memref<160x128xbf16, #tpu.memory_space<vmem>>, vector<32x128xbf16>,
    %c0_57 = arith.constant 0 : index
    %c0_58 = arith.constant 0 : index
    %65 = vector.load %arg4[%c0_57, %c0_58] : memref<32x160xbf16, #tpu.memory_space<vmem>>, vector<32x160xbf16>
    %c0_59 = arith.constant 0 : index
    %c0_60 = arith.constant 0 : index
    %66 = vector.load %arg13[%c0_59, %c0_60] : memref<160x128xbf16, #tpu.memory_space<vmem>>, vector<160x128xbf16>
    %cst_61 = arith.constant dense<0.000000e+00> : vector<32x128xf32>
    %67 = tpu.matmul %65, %66, %cst_61 {dimension_numbers = #tpu.dot_dimension_numbers<[1], [0], [0], [1], [0, 0, 1, 1], [], []>} : vector<32x160xbf16>, vector<160x128xbf16>, vector<32x128xf32> -> vector<32x128xf32>
    %c0_62 = arith.constant 0 : index
    %c0_63 = arith.constant 0 : index
    %68 = vector.load %arg8[%c0_62, %c0_63] : memref<32x1xf32, #tpu.memory_space<vmem>>, vector<32x1xf32>
    %69 = vector.broadcast %68 : vector<32x1xf32> to vector<32x128xf32>
    %70 = arith.addf %67, %69 : vector<32x128xf32>
    %cst_64 = arith.constant 0.000000e+00 : f32
    %71 = vector.broadcast %cst_64 : f32 to vector<32x128xf32>
    %72 = arith.maximumf %70, %71 : vector<32x128xf32>
    %73 = arith.truncf %72 : vector<32x128xf32> to vector<32x128xbf16>
    %c0_65 = arith.constant 0 : index
    %c2_66 = arith.constant 2 : index
    %74 = vector.load %arg12[%c0_65, %c2_66] : memref<32x132xbf16, #tpu.memory_space<vmem>>, vector<32x128xbf16>
    tpu.vector_store %arg12[%c0_65, %c2_66], %73 {strides = array<i32>} : memref<32x132xbf16, #tpu.memory_space<vmem>>, vector<32x128xbf16>,
    %c0_67 = arith.constant 0 : index
    %c1_68 = arith.constant 1 : index
    %75 = vector.load %arg12[%c0_67, %c1_68] : memref<32x132xbf16, #tpu.memory_space<vmem>>, vector<32x128xbf16>
    %c0_69 = arith.constant 0 : index
    %c0_70 = arith.constant 0 : index
    %76 = vector.load %arg13[%c0_69, %c0_70] : memref<160x128xbf16, #tpu.memory_space<vmem>>, vector<32x128xbf16>
    tpu.vector_store %arg13[%c0_69, %c0_70], %75 {strides = array<i32>} : memref<160x128xbf16, #tpu.memory_space<vmem>>, vector<32x128xbf16>,
    %c0_71 = arith.constant 0 : index
    %c2_72 = arith.constant 2 : index
    %77 = vector.load %arg12[%c0_71, %c2_72] : memref<32x132xbf16, #tpu.memory_space<vmem>>, vector<32x128xbf16>
    %c32_73 = arith.constant 32 : index
    %c0_74 = arith.constant 0 : index
    %78 = vector.load %arg13[%c32_73, %c0_74] : memref<160x128xbf16, #tpu.memory_space<vmem>>, vector<32x128xbf16>
    tpu.vector_store %arg13[%c32_73, %c0_74], %77 {strides = array<i32>} : memref<160x128xbf16, #tpu.memory_space<vmem>>, vector<32x128xbf16>,
    %c0_75 = arith.constant 0 : index
    %c3_76 = arith.constant 3 : index
    %79 = vector.load %arg12[%c0_75, %c3_76] : memref<32x132xbf16, #tpu.memory_space<vmem>>, vector<32x128xbf16>
    %c64_77 = arith.constant 64 : index
    %c0_78 = arith.constant 0 : index
    %80 = vector.load %arg13[%c64_77, %c0_78] : memref<160x128xbf16, #tpu.memory_space<vmem>>, vector<32x128xbf16>
    tpu.vector_store %arg13[%c64_77, %c0_78], %79 {strides = array<i32>} : memref<160x128xbf16, #tpu.memory_space<vmem>>, vector<32x128xbf16>,
    %c0_79 = arith.constant 0 : index
    %c0_80 = arith.constant 0 : index
    %81 = vector.load %arg5[%c0_79, %c0_80] : memref<32x96xbf16, #tpu.memory_space<vmem>>, vector<32x96xbf16>
    %c0_81 = arith.constant 0 : index
    %c0_82 = arith.constant 0 : index
    %82 = vector.load %arg13[%c0_81, %c0_82] : memref<160x128xbf16, #tpu.memory_space<vmem>>, vector<96x128xbf16>
    %cst_83 = arith.constant dense<0.000000e+00> : vector<32x128xf32>
    %83 = tpu.matmul %81, %82, %cst_83 {dimension_numbers = #tpu.dot_dimension_numbers<[1], [0], [0], [1], [0, 0, 1, 1], [], []>} : vector<32x96xbf16>, vector<96x128xbf16>, vector<32x128xf32> -> vector<32x128xf32>
    %c0_84 = arith.constant 0 : index
    %c0_85 = arith.constant 0 : index
    %84 = vector.load %arg9[%c0_84, %c0_85] : memref<32x1xf32, #tpu.memory_space<vmem>>, vector<32x1xf32>
    %85 = vector.broadcast %84 : vector<32x1xf32> to vector<32x128xf32>
    %86 = arith.addf %83, %85 : vector<32x128xf32>
    %cst_86 = arith.constant 0.000000e+00 : f32
    %87 = vector.broadcast %cst_86 : f32 to vector<32x128xf32>
    %88 = arith.maximumf %86, %87 : vector<32x128xf32>
    %c0_87 = arith.constant 0 : index
    %c0_88 = arith.constant 0 : index
    %c0_89 = arith.constant 0 : index
    %89 = vector.load %arg10[%c0_87, %c0_88, %c0_89] : memref<1x32x128xf32, #tpu.memory_space<vmem>>, vector<1x32x128xf32>
    %90 = vector.shape_cast %89 : vector<1x32x128xf32> to vector<32x128xf32>
    %91 = vector.shape_cast %88 : vector<32x128xf32> to vector<1x32x128xf32>
    tpu.vector_store %arg10[%c0_87, %c0_88, %c0_89], %91 {strides = array<i32>} : memref<1x32x128xf32, #tpu.memory_space<vmem>>, vector<1x32x128xf32>,
    return
  }
  func.func @transform_0(%arg0: i32) -> (i32, i32, i32) {
    %c0_i32 = arith.constant 0 : i32
    %c0_i32_0 = arith.constant 0 : i32
    %c0_i32_1 = arith.constant 0 : i32
    return %arg0, %c0_i32, %c0_i32_0 : i32, i32, i32
  }
  func.func @transform_1(%arg0: i32) -> (i32, i32) {
    %c0_i32 = arith.constant 0 : i32
    %c0_i32_0 = arith.constant 0 : i32
    %c0_i32_1 = arith.constant 0 : i32
    return %c0_i32, %c0_i32_0 : i32, i32
  }
  func.func @transform_2(%arg0: i32) -> (i32, i32) {
    %c0_i32 = arith.constant 0 : i32
    %c0_i32_0 = arith.constant 0 : i32
    %c0_i32_1 = arith.constant 0 : i32
    return %c0_i32, %c0_i32_0 : i32, i32
  }
  func.func @transform_3(%arg0: i32) -> (i32, i32) {
    %c0_i32 = arith.constant 0 : i32
    %c0_i32_0 = arith.constant 0 : i32
    %c0_i32_1 = arith.constant 0 : i32
    return %c0_i32, %c0_i32_0 : i32, i32
  }
  func.func @transform_4(%arg0: i32) -> (i32, i32) {
    %c0_i32 = arith.constant 0 : i32
    %c0_i32_0 = arith.constant 0 : i32
    %c0_i32_1 = arith.constant 0 : i32
    return %c0_i32, %c0_i32_0 : i32, i32
  }
  func.func @transform_5(%arg0: i32) -> (i32, i32) {
    %c0_i32 = arith.constant 0 : i32
    %c0_i32_0 = arith.constant 0 : i32
    %c0_i32_1 = arith.constant 0 : i32
    return %c0_i32, %c0_i32_0 : i32, i32
  }
  func.func @transform_6(%arg0: i32) -> (i32, i32) {
    %c0_i32 = arith.constant 0 : i32
    %c0_i32_0 = arith.constant 0 : i32
    %c0_i32_1 = arith.constant 0 : i32
    return %c0_i32, %c0_i32_0 : i32, i32
  }
  func.func @transform_7(%arg0: i32) -> (i32, i32) {
    %c0_i32 = arith.constant 0 : i32
    %c0_i32_0 = arith.constant 0 : i32
    %c0_i32_1 = arith.constant 0 : i32
    return %c0_i32, %c0_i32_0 : i32, i32
  }
  func.func @transform_8(%arg0: i32) -> (i32, i32) {
    %c0_i32 = arith.constant 0 : i32
    %c0_i32_0 = arith.constant 0 : i32
    %c0_i32_1 = arith.constant 0 : i32
    return %c0_i32, %c0_i32_0 : i32, i32
  }
  func.func @transform_9(%arg0: i32) -> (i32, i32, i32) {
    %c0_i32 = arith.constant 0 : i32
    %c0_i32_0 = arith.constant 0 : i32
    %c0_i32_1 = arith.constant 0 : i32
    return %arg0, %c0_i32, %c0_i32_0 : i32, i32, i32
  }
}

</mosaic_0001>

<llo_original>
// kernel: tpu_custom_call.1
$region0: #{tpu_custom_call.1}
  #allocation0 [shape = 'u32[]', space=smem, size = 0x4, offset = 0x4, fixed_abs, tag = 'smem constant byte address 0x4 - core index']
  #allocation1 [shape = 'u32[144,128]{1,0:T(1,128)}', space=vmem, size = 0x12000, scoped, tag = 'internal scratch']
  #allocation2 [shape = 'bf16[32,132]{1,0:T(8,128)(2,1)}', space=vmem, size = 0x4000, scoped, tag = 'scratch operand']
  #allocation3 [shape = 'bf16[32,132]{1,0:T(8,128)(2,1)}', space=vmem, size = 0x4000, scoped, tag = 'scratch operand']
  #allocation4 [shape = 'bf16[160,128]{1,0:T(8,128)(2,1)}', space=vmem, size = 0xa000, scoped, tag = 'scratch operand']
  %s0 = inlined_call_operand.vmem [shape: f32[2,1,128], index: 0, kind: input, shape index: {}]
  %s1 = inlined_call_operand.vmem [shape: bf16[32,3], index: 1, kind: input, shape index: {}]
  %s2 = inlined_call_operand.vmem [shape: bf16[32,96], index: 2, kind: input, shape index: {}]
  %s3 = inlined_call_operand.vmem [shape: bf16[32,160], index: 3, kind: input, shape index: {}]
  %s4 = inlined_call_operand.vmem [shape: bf16[32,96], index: 4, kind: input, shape index: {}]
  %s5 = inlined_call_operand.vmem [shape: f32[32,1], index: 5, kind: input, shape index: {}]
  %s6 = inlined_call_operand.vmem [shape: f32[32,1], index: 6, kind: input, shape index: {}]
  %s7 = inlined_call_operand.vmem [shape: f32[32,1], index: 7, kind: input, shape index: {}]
  %s8 = inlined_call_operand.vmem [shape: f32[32,1], index: 8, kind: input, shape index: {}]
  %s9 = inlined_call_operand.hbm [shape: f32[2,32,128], index: 9, kind: output, shape index: {}]
  %s10 = sld [smem:[#allocation0]]
  $region69: #{tpu_custom_call.1} parent=0
    _
  %s12 = ssub.s32 1, %s10
  %s13 = scalar_select 0, %s12, %s10
  $region1: #{tpu_custom_call.1} parent=0
    #allocation5 [shape = 'u8[32768]{0}', space=vmem, size = 0x8000, scoped, tag = 'output window, operand 0']
    #allocation6 [shape = 's32[2]{0}', space=sflag, size = 0x8, scoped, tag = 'scoped memory for tpu_custom_call.1']
    %14 = vsyncpa [#allocation6], 0
    %s15 = scalar_lea.sflag [#allocation6], 1
    %16 = vsyncpa %s15, 0
    loop: start=0, step=1, limit=4
    $region2: #{tpu_custom_call.1} parent=1 // loop_pre_header
      _
    $region3: #{tpu_custom_call.1} parent=1 // loop_header
      %s18 = sphi 0, %s22
      %p19 = scmp.ge.s32.totalorder %s18, 4
      %s28 = sphi 0, %s30
      %s31 = sphi 0, %s28
      %s32 = sphi 0, %s31
      %s48 = sphi 0, %s32
      %s52 = sphi 0, %s52
      %s54 = sphi 0, %s52
      %s55 = sphi 0, %s54
      %s69 = sphi 0, %s55
      %s73 = sphi 0, %s73
      %s75 = sphi 0, %s73
      %s76 = sphi 0, %s75
      %s90 = sphi 0, %s76
      %s94 = sphi 0, %s94
      %s96 = sphi 0, %s94
      %s97 = sphi 0, %s96
      %s111 = sphi 0, %s97
      %s115 = sphi 0, %s115
      %s117 = sphi 0, %s115
      %s118 = sphi 0, %s117
      %s132 = sphi 0, %s118
      %s136 = sphi 0, %s136
      %s138 = sphi 0, %s136
      %s139 = sphi 0, %s138
      %s153 = sphi 0, %s139
      %s157 = sphi 0, %s157
      %s159 = sphi 0, %s157
      %s160 = sphi 0, %s159
      %s174 = sphi 0, %s160
      %s178 = sphi 0, %s178
      %s180 = sphi 0, %s178
      %s181 = sphi 0, %s180
      %s195 = sphi 0, %s181
      %s199 = sphi 0, %s199
      %s201 = sphi 0, %s199
      %s202 = sphi 0, %s201
      %s216 = sphi 0, %s202
      %s222 = sphi 0, %s224
      %s225 = sphi 0, %s222
      %s226 = sphi 0, %s225
      %s242 = sphi 0, %s226
    $region4: #{tpu_custom_call.1} parent=1 // loop_header_branch
      %21 = sbr.rel (%p19) target = $region8
    $region5: #{tpu_custom_call.1} parent=1 // loop_body
      %s23 = ssub.s32 %s18, 1
      %s24 = ssub.s32 %s18, 2
      %s25 = sadd.s32 %s18, 1
      %s26 = ssub.s32 %s18, %s25
      %p27 = scmp.eq.s32.totalorder %s26, 0
      %s29 = sadd.s32 %s28, 1
      %s30 = scalar_select %p27, %s28, %s29
      %p33 = pneg %p27
      %p34 = scmp.eq.s32.totalorder %s18, 1
      %p35 = por %p33, %p34
      %p36 = scmp.ne.s32.totalorder %s28, %s31
      %p37 = scmp.eq.s32.totalorder %s18, 0
      %p38 = por %p36, %p37
      %p39 = scmp.ne.s32.totalorder %s28, %s31
      %p40 = scmp.eq.s32.totalorder %s23, 1
      %p41 = por %p39, %p40
      %p42 = scmp.ne.s32.totalorder %s31, %s32
      %p43 = scmp.eq.s32.totalorder %s23, 0
      %p44 = por %p42, %p43
      %p45 = scmp.ne.s32.totalorder %s31, %s32
      %p46 = scmp.eq.s32.totalorder %s24, 1
      %p47 = por %p45, %p46
      %p49 = scmp.ne.s32.totalorder %s32, %s48
      %p50 = scmp.eq.s32.totalorder %s24, 0
      %p51 = por %p49, %p50
      %s53 = sadd.s32 %s52, 1
      %p56 = scmp.eq.s32.totalorder %s18, 1
      %p57 = scmp.ne.s32.totalorder %s52, %s54
      %p58 = scmp.eq.s32.totalorder %s18, 0
      %p59 = por %p57, %p58
      %p60 = scmp.ne.s32.totalorder %s52, %s54
      %p61 = scmp.eq.s32.totalorder %s23, 1
      %p62 = por %p60, %p61
      %p63 = scmp.ne.s32.totalorder %s54, %s55
      %p64 = scmp.eq.s32.totalorder %s23, 0
      %p65 = por %p63, %p64
      %p66 = scmp.ne.s32.totalorder %s54, %s55
      %p67 = scmp.eq.s32.totalorder %s24, 1
      %p68 = por %p66, %p67
      %p70 = scmp.ne.s32.totalorder %s55, %s69
      %p71 = scmp.eq.s32.totalorder %s24, 0
      %p72 = por %p70, %p71
      %s74 = sadd.s32 %s73, 1
      %p77 = scmp.eq.s32.totalorder %s18, 1
      %p78 = scmp.ne.s32.totalorder %s73, %s75
      %p79 = scmp.eq.s32.totalorder %s18, 0
      %p80 = por %p78, %p79
      %p81 = scmp.ne.s32.totalorder %s73, %s75
      %p82 = scmp.eq.s32.totalorder %s23, 1
      %p83 = por %p81, %p82
      %p84 = scmp.ne.s32.totalorder %s75, %s76
      %p85 = scmp.eq.s32.totalorder %s23, 0
      %p86 = por %p84, %p85
      %p87 = scmp.ne.s32.totalorder %s75, %s76
      %p88 = scmp.eq.s32.totalorder %s24, 1
      %p89 = por %p87, %p88
      %p91 = scmp.ne.s32.totalorder %s76, %s90
      %p92 = scmp.eq.s32.totalorder %s24, 0
      %p93 = por %p91, %p92
      %s95 = sadd.s32 %s94, 1
      %p98 = scmp.eq.s32.totalorder %s18, 1
      %p99 = scmp.ne.s32.totalorder %s94, %s96
      %p100 = scmp.eq.s32.totalorder %s18, 0
      %p101 = por %p99, %p100
      %p102 = scmp.ne.s32.totalorder %s94, %s96
      %p103 = scmp.eq.s32.totalorder %s23, 1
      %p104 = por %p102, %p103
      %p105 = scmp.ne.s32.totalorder %s96, %s97
      %p106 = scmp.eq.s32.totalorder %s23, 0
      %p107 = por %p105, %p106
      %p108 = scmp.ne.s32.totalorder %s96, %s97
      %p109 = scmp.eq.s32.totalorder %s24, 1
      %p110 = por %p108, %p109
      %p112 = scmp.ne.s32.totalorder %s97, %s111
      %p113 = scmp.eq.s32.totalorder %s24, 0
      %p114 = por %p112, %p113
      %s116 = sadd.s32 %s115, 1
      %p119 = scmp.eq.s32.totalorder %s18, 1
      %p120 = scmp.ne.s32.totalorder %s115, %s117
      %p121 = scmp.eq.s32.totalorder %s18, 0
      %p122 = por %p120, %p121
      %p123 = scmp.ne.s32.totalorder %s115, %s117
      %p124 = scmp.eq.s32.totalorder %s23, 1
      %p125 = por %p123, %p124
      %p126 = scmp.ne.s32.totalorder %s117, %s118
      %p127 = scmp.eq.s32.totalorder %s23, 0
      %p128 = por %p126, %p127
      %p129 = scmp.ne.s32.totalorder %s117, %s118
      %p130 = scmp.eq.s32.totalorder %s24, 1
      %p131 = por %p129, %p130
      %p133 = scmp.ne.s32.totalorder %s118, %s132
      %p134 = scmp.eq.s32.totalorder %s24, 0
      %p135 = por %p133, %p134
      %s137 = sadd.s32 %s136, 1
      %p140 = scmp.eq.s32.totalorder %s18, 1
      %p141 = scmp.ne.s32.totalorder %s136, %s138
      %p142 = scmp.eq.s32.totalorder %s18, 0
      %p143 = por %p141, %p142
      %p144 = scmp.ne.s32.totalorder %s136, %s138
      %p145 = scmp.eq.s32.totalorder %s23, 1
      %p146 = por %p144, %p145
      %p147 = scmp.ne.s32.totalorder %s138, %s139
      %p148 = scmp.eq.s32.totalorder %s23, 0
      %p149 = por %p147, %p148
      %p150 = scmp.ne.s32.totalorder %s138, %s139
      %p151 = scmp.eq.s32.totalorder %s24, 1
      %p152 = por %p150, %p151
      %p154 = scmp.ne.s32.totalorder %s139, %s153
      %p155 = scmp.eq.s32.totalorder %s24, 0
      %p156 = por %p154, %p155
      %s158 = sadd.s32 %s157, 1
      %p161 = scmp.eq.s32.totalorder %s18, 1
      %p162 = scmp.ne.s32.totalorder %s157, %s159
      %p163 = scmp.eq.s32.totalorder %s18, 0
      %p164 = por %p162, %p163
      %p165 = scmp.ne.s32.totalorder %s157, %s159
      %p166 = scmp.eq.s32.totalorder %s23, 1
      %p167 = por %p165, %p166
      %p168 = scmp.ne.s32.totalorder %s159, %s160
      %p169 = scmp.eq.s32.totalorder %s23, 0
      %p170 = por %p168, %p169
      %p171 = scmp.ne.s32.totalorder %s159, %s160
      %p172 = scmp.eq.s32.totalorder %s24, 1
      %p173 = por %p171, %p172
      %p175 = scmp.ne.s32.totalorder %s160, %s174
      %p176 = scmp.eq.s32.totalorder %s24, 0
      %p177 = por %p175, %p176
      %s179 = sadd.s32 %s178, 1
      %p182 = scmp.eq.s32.totalorder %s18, 1
      %p183 = scmp.ne.s32.totalorder %s178, %s180
      %p184 = scmp.eq.s32.totalorder %s18, 0
      %p185 = por %p183, %p184
      %p186 = scmp.ne.s32.totalorder %s178, %s180
      %p187 = scmp.eq.s32.totalorder %s23, 1
      %p188 = por %p186, %p187
      %p189 = scmp.ne.s32.totalorder %s180, %s181
      %p190 = scmp.eq.s32.totalorder %s23, 0
      %p191 = por %p189, %p190
      %p192 = scmp.ne.s32.totalorder %s180, %s181
      %p193 = scmp.eq.s32.totalorder %s24, 1
      %p194 = por %p192, %p193
      %p196 = scmp.ne.s32.totalorder %s181, %s195
      %p197 = scmp.eq.s32.totalorder %s24, 0
      %p198 = por %p196, %p197
      %s200 = sadd.s32 %s199, 1
      %p203 = scmp.eq.s32.totalorder %s18, 1
      %p204 = scmp.ne.s32.totalorder %s199, %s201
      %p205 = scmp.eq.s32.totalorder %s18, 0
      %p206 = por %p204, %p205
      %p207 = scmp.ne.s32.totalorder %s199, %s201
      %p208 = scmp.eq.s32.totalorder %s23, 1
      %p209 = por %p207, %p208
      %p210 = scmp.ne.s32.totalorder %s201, %s202
      %p211 = scmp.eq.s32.totalorder %s23, 0
      %p212 = por %p210, %p211
      %p213 = scmp.ne.s32.totalorder %s201, %s202
      %p214 = scmp.eq.s32.totalorder %s24, 1
      %p215 = por %p213, %p214
      %p217 = scmp.ne.s32.totalorder %s202, %s216
      %p218 = scmp.eq.s32.totalorder %s24, 0
      %p219 = por %p217, %p218
      %s220 = ssub.s32 %s18, %s25
      %p221 = scmp.eq.s32.totalorder %s220, 0
      %s223 = sadd.s32 %s222, 1
      %s224 = scalar_select %p221, %s222, %s223
      %p227 = pneg %p221
      %p228 = scmp.eq.s32.totalorder %s18, 1
      %p229 = por %p227, %p228
      %p230 = scmp.ne.s32.totalorder %s222, %s225
      %p231 = scmp.eq.s32.totalorder %s18, 0
      %p232 = por %p230, %p231
      %p233 = scmp.ne.s32.totalorder %s222, %s225
      %p234 = scmp.eq.s32.totalorder %s23, 1
      %p235 = por %p233, %p234
      %p236 = scmp.ne.s32.totalorder %s225, %s226
      %p237 = scmp.eq.s32.totalorder %s23, 0
      %p238 = por %p236, %p237
      %p239 = scmp.ne.s32.totalorder %s225, %s226
      %p240 = scmp.eq.s32.totalorder %s24, 1
      %p241 = por %p239, %p240
      %p243 = scmp.ne.s32.totalorder %s226, %s242
      %p244 = scmp.eq.s32.totalorder %s24, 0
      %p245 = por %p243, %p244
      %p246 = scmp.le.s32.totalorder 1, %s18
      %p247 = scmp.lt.s32.totalorder %s18, 3
      %p248 = pnand %p246, %p247
      %p249 = pneg %p248
      // Predicated region
      $region9: #{tpu_custom_call.1} parent=5 // pred_check
        _
      $region10: #{tpu_custom_call.1} parent=5 // pred_check_branch
        %251 = sbr.rel (%p248) target = $region12
      $region11: #{tpu_custom_call.1} parent=5 // pred_region
        %s252 = ssub.s32 %s18, 1
        // Predicated region
        $region13: #{tpu_custom_call.1} parent=11 // pred_check
          %p253 = pneg %p65
        $region14: #{tpu_custom_call.1} parent=11 // pred_check_branch
          %255 = sbr.rel (%p253) target = $region16
        $region15: #{tpu_custom_call.1} parent=11 // pred_region
          _
        $region16: #{tpu_custom_call.1} parent=11 // pred_fallthru
          _
        // Predicated region
        $region17: #{tpu_custom_call.1} parent=11 // pred_check
          %p256 = pneg %p86
        $region18: #{tpu_custom_call.1} parent=11 // pred_check_branch
          %258 = sbr.rel (%p256) target = $region20
        $region19: #{tpu_custom_call.1} parent=11 // pred_region
          _
        $region20: #{tpu_custom_call.1} parent=11 // pred_fallthru
          _
        // Predicated region
        $region21: #{tpu_custom_call.1} parent=11 // pred_check
          %p259 = pneg %p107
        $region22: #{tpu_custom_call.1} parent=11 // pred_check_branch
          %261 = sbr.rel (%p259) target = $region24
        $region23: #{tpu_custom_call.1} parent=11 // pred_region
          _
        $region24: #{tpu_custom_call.1} parent=11 // pred_fallthru
          _
        // Predicated region
        $region25: #{tpu_custom_call.1} parent=11 // pred_check
          %p262 = pneg %p128
        $region26: #{tpu_custom_call.1} parent=11 // pred_check_branch
          %264 = sbr.rel (%p262) target = $region28
        $region27: #{tpu_custom_call.1} parent=11 // pred_region
          _
        $region28: #{tpu_custom_call.1} parent=11 // pred_fallthru
          _
        // Predicated region
        $region29: #{tpu_custom_call.1} parent=11 // pred_check
          %p265 = pneg %p149
        $region30: #{tpu_custom_call.1} parent=11 // pred_check_branch
          %267 = sbr.rel (%p265) target = $region32
        $region31: #{tpu_custom_call.1} parent=11 // pred_region
          _
        $region32: #{tpu_custom_call.1} parent=11 // pred_fallthru
          _
        // Predicated region
        $region33: #{tpu_custom_call.1} parent=11 // pred_check
          %p268 = pneg %p170
        $region34: #{tpu_custom_call.1} parent=11 // pred_check_branch
          %270 = sbr.rel (%p268) target = $region36
        $region35: #{tpu_custom_call.1} parent=11 // pred_region
          _
        $region36: #{tpu_custom_call.1} parent=11 // pred_fallthru
          _
        // Predicated region
        $region37: #{tpu_custom_call.1} parent=11 // pred_check
          %p271 = pneg %p191
        $region38: #{tpu_custom_call.1} parent=11 // pred_check_branch
          %273 = sbr.rel (%p271) target = $region40
        $region39: #{tpu_custom_call.1} parent=11 // pred_region
          _
        $region40: #{tpu_custom_call.1} parent=11 // pred_fallthru
          _
        // Predicated region
        $region41: #{tpu_custom_call.1} parent=11 // pred_check
          %p274 = pneg %p212
        $region42: #{tpu_custom_call.1} parent=11 // pred_check_branch
          %276 = sbr.rel (%p274) target = $region44
        $region43: #{tpu_custom_call.1} parent=11 // pred_region
          _
        $region44: #{tpu_custom_call.1} parent=11 // pred_fallthru
          _
      $region12: #{tpu_custom_call.1} parent=5 // pred_fallthru
        _
      %p277 = scmp.lt.s32.totalorder %s18, 2
      // Predicated region
      $region45: #{tpu_custom_call.1} parent=5 // pred_check
        %p278 = pneg %p277
      $region46: #{tpu_custom_call.1} parent=5 // pred_check_branch
        %280 = sbr.rel (%p278) target = $region48
      $region47: #{tpu_custom_call.1} parent=5 // pred_region
        // Predicated region
        $region49: #{tpu_custom_call.1} parent=47 // pred_check
          %p281 = pneg %p38
        $region50: #{tpu_custom_call.1} parent=47 // pred_check_branch
          %283 = sbr.rel (%p281) target = $region52
        $region51: #{tpu_custom_call.1} parent=47 // pred_region
          %p284 = scmp.lt.s32.totalorder %s18, 1
          %s285 = scalar_select %p284, %s18, 1
          %s286 = scalar_lea.vmem %s0, %s285
        $region52: #{tpu_custom_call.1} parent=47 // pred_fallthru
          _
      $region48: #{tpu_custom_call.1} parent=5 // pred_fallthru
        _
      %p287 = scmp.le.s32.totalorder 1, %s18
      %p288 = scmp.lt.s32.totalorder %s18, 3
      %p289 = pnand %p287, %p288
      %p290 = pneg %p289
      // Predicated region
      $region53: #{tpu_custom_call.1} parent=5 // pred_check
        _
      $region54: #{tpu_custom_call.1} parent=5 // pred_check_branch
        %292 = sbr.rel (%p289) target = $region56
      $region55: #{tpu_custom_call.1} parent=5 // pred_region
        %s293 = ssub.s32 %s18, 1
        %p294 = scmp.lt.s32.totalorder %s23, 1
        %s295 = scalar_select %p294, %s23, 1
        %s296 = scalar_lea.vmem %s0, %s295
        %p297 = pneg %p44
        %p298 = pneg %p41
        %p299 = pneg %p65
        %p300 = pneg %p62
        %p301 = pneg %p86
        %p302 = pneg %p83
        %p303 = pneg %p107
        %p304 = pneg %p104
        %p305 = pneg %p128
        %p306 = pneg %p125
        %p307 = pneg %p149
        %p308 = pneg %p146
        %p309 = pneg %p170
        %p310 = pneg %p167
        %p311 = pneg %p191
        %p312 = pneg %p188
        %p313 = pneg %p212
        %p314 = pneg %p209
        %p315 = pneg %p238
        %p316 = pneg %p235
        %s317 = sand.u32 %s225, 1
        %s318 = scalar_lea.sflag [#allocation6], %s317
        %s319 = sand.u32 %s225, 1
        %s320 = smul.addr %s319, 32
        %s321 = scalar_lea.vmem [#allocation5], %s320
        %p322 = scmp.lt.s32.totalorder %s23, 1
        %s323 = scalar_select %p322, %s23, 1
        %s324 = scalar_lea.vmem %s0, %s323
        %vm326 = vcmask 1043456
        %vm327 = vcmask 31748
        %vm328 = vmor %vm327, %vm326
        %329 = vst.msk [vmem:[#allocation2] sm:$0xff] %vm328, 0
        %330 = vst.msk [vmem:[#allocation2 + $0x8] sm:$0xff] %vm328, 0
        %331 = vst.msk [vmem:[#allocation2 + $0x10] sm:$0xff] %vm328, 0
        %332 = vst.msk [vmem:[#allocation2 + $0x18] sm:$0xff] %vm328, 0
        %333 = vst.msk [vmem:[#allocation3] sm:$0xff] %vm328, 0
        %334 = vst.msk [vmem:[#allocation3 + $0x8] sm:$0xff] %vm328, 0
        %335 = vst.msk [vmem:[#allocation3 + $0x10] sm:$0xff] %vm328, 0
        %336 = vst.msk [vmem:[#allocation3 + $0x18] sm:$0xff] %vm328, 0
        %v337 = vld [vmem:[%s324] sm:$0x1]
        %v338 = vpack.c.bf16 %v337, %v337
        %v340 = vunpack.c.l.b16 %v338
        %v341 = vpack.c.b16 %v340, %v340
        %342 = vrot.lane.b32.xlu0 %v341, 2
        %v343 = vpop.permute.xlu0 %342
        %v344 = vrot.slane %v343, 4
        %vm345 = vcmask 15360
        %v346 = vsel %vm345, %v344, %v343
        %vm348 = vcmask 1040400
        %vm349 = vsmask.f32 256
        %vm350 = vmand %vm348, %vm349
        %vm351 = vcmask 12292
        %vm352 = vsmask.f32 4352
        %vm353 = vmand %vm351, %vm352
        %vm354 = vmor %vm353, %vm350
        %v355 = vld [vmem:[#allocation2] sm:$0x11]
        %v356 = vsel %vm354, %v346, %v355
        %357 = vst [vmem:[#allocation2] sm:$0x11] %v356
        %v358 = vld [vmem:[%s1] sm:$0xf]
        %v359 = vld [vmem:[%s1 + $0x4] sm:$0xf]
        %v360 = vld [vmem:[%s1 + $0x8] sm:$0xf]
        %v361 = vld [vmem:[%s1 + $0xc] sm:$0xf]
        %v362 = vunpack.c.l.bf16 %v358
        %v363 = vunpack.c.l.bf16 %v359
        %v364 = vunpack.c.l.bf16 %v360
        %v365 = vunpack.c.l.bf16 %v361
        %v366 = vld [vmem:[#allocation2] sm:$0x11]
        %v367 = vunpack.c.l.bf16 %v366
        %v368 = vunpack.c.h.bf16 %v366
        %370 = vset.pattern.permute.xlu0 0
        %371 = vperm.xlu0 %370, %v362
        %v372 = vpop.permute.xlu0 %371
        %375 = vset.pattern.permute.xlu0 0
        %376 = vperm.xlu0 %375, %v363
        %v377 = vpop.permute.xlu0 %376
        %380 = vset.pattern.permute.xlu0 0
        %381 = vperm.xlu0 %380, %v364
        %v382 = vpop.permute.xlu0 %381
        %385 = vset.pattern.permute.xlu0 0
        %386 = vperm.xlu0 %385, %v365
        %v387 = vpop.permute.xlu0 %386
        %v389 = vlaneseq
        %v390 = vshrl.u32 %v389, 7
        %v391 = vsub.s32 0, %v390
        %v392 = vrot.slane %v367, %v391
        %v393 = vlaneseq
        %v394 = vshrl.u32 %v393, 7
        %v395 = vsub.s32 0, %v394
        %v396 = vrot.slane %v368, %v395
        %v397 = vmul.f32 %v372, %v392
        %v398 = vmul.f32 %v372, %v396
        %v399 = vmul.f32 %v377, %v392
        %v400 = vmul.f32 %v377, %v396
        %v401 = vmul.f32 %v382, %v392
        %v402 = vmul.f32 %v382, %v396
        %v403 = vmul.f32 %v387, %v392
        %v404 = vmul.f32 %v387, %v396
        %v405 = vadd.f32 %v397, 0.0
        %v406 = vadd.f32 %v398, 0.0
        %v407 = vadd.f32 %v399, 0.0
        %v408 = vadd.f32 %v400, 0.0
        %v409 = vadd.f32 %v401, 0.0
        %v410 = vadd.f32 %v402, 0.0
        %v411 = vadd.f32 %v403, 0.0
        %v412 = vadd.f32 %v404, 0.0
        %413 = vset.pattern.permute.xlu0 1
        %414 = vperm.xlu0 %413, %v362
        %v415 = vpop.permute.xlu0 %414
        %417 = vset.pattern.permute.xlu0 1
        %418 = vperm.xlu0 %417, %v363
        %v419 = vpop.permute.xlu0 %418
        %421 = vset.pattern.permute.xlu0 1
        %422 = vperm.xlu0 %421, %v364
        %v423 = vpop.permute.xlu0 %422
        %425 = vset.pattern.permute.xlu0 1
        %426 = vperm.xlu0 %425, %v365
        %v427 = vpop.permute.xlu0 %426
        %v429 = vmul.f32 %v415, %v392
        %v430 = vmul.f32 %v415, %v396
        %v431 = vmul.f32 %v419, %v392
        %v432 = vmul.f32 %v419, %v396
        %v433 = vmul.f32 %v423, %v392
        %v434 = vmul.f32 %v423, %v396
        %v435 = vmul.f32 %v427, %v392
        %v436 = vmul.f32 %v427, %v396
        %445 = vrot.lane.b32.xlu0 %v429, 127
        %v446 = vpop.permute.xlu0 %445
        %447 = vrot.lane.b32.xlu0 %v430, 127
        %v448 = vpop.permute.xlu0 %447
        %449 = vrot.lane.b32.xlu0 %v431, 127
        %v450 = vpop.permute.xlu0 %449
        %451 = vrot.lane.b32.xlu0 %v432, 127
        %v452 = vpop.permute.xlu0 %451
        %453 = vrot.lane.b32.xlu0 %v433, 127
        %v454 = vpop.permute.xlu0 %453
        %455 = vrot.lane.b32.xlu0 %v434, 127
        %v456 = vpop.permute.xlu0 %455
        %457 = vrot.lane.b32.xlu0 %v435, 127
        %v458 = vpop.permute.xlu0 %457
        %459 = vrot.lane.b32.xlu0 %v436, 127
        %v460 = vpop.permute.xlu0 %459
        %vm461 = vcmask 1039360
        %v462 = vsel %vm461, %v446, %v448
        %v463 = vsel %vm461, %v450, %v452
        %v464 = vsel %vm461, %v454, %v456
        %v465 = vsel %vm461, %v458, %v460
        %v474 = vadd.f32 %v405, %v462
        %v475 = vadd.f32 %v406, %v448
        %v476 = vadd.f32 %v407, %v463
        %v477 = vadd.f32 %v408, %v452
        %v478 = vadd.f32 %v409, %v464
        %v479 = vadd.f32 %v410, %v456
        %v480 = vadd.f32 %v411, %v465
        %v481 = vadd.f32 %v412, %v460
        %482 = vset.pattern.permute.xlu0 2
        %483 = vperm.xlu0 %482, %v362
        %v484 = vpop.permute.xlu0 %483
        %486 = vset.pattern.permute.xlu0 2
        %487 = vperm.xlu0 %486, %v363
        %v488 = vpop.permute.xlu0 %487
        %490 = vset.pattern.permute.xlu0 2
        %491 = vperm.xlu0 %490, %v364
        %v492 = vpop.permute.xlu0 %491
        %494 = vset.pattern.permute.xlu0 2
        %495 = vperm.xlu0 %494, %v365
        %v496 = vpop.permute.xlu0 %495
        %v498 = vmul.f32 %v484, %v392
        %v499 = vmul.f32 %v484, %v396
        %v500 = vmul.f32 %v488, %v392
        %v501 = vmul.f32 %v488, %v396
        %v502 = vmul.f32 %v492, %v392
        %v503 = vmul.f32 %v492, %v396
        %v504 = vmul.f32 %v496, %v392
        %v505 = vmul.f32 %v496, %v396
        %514 = vrot.lane.b32.xlu0 %v498, 126
        %v515 = vpop.permute.xlu0 %514
        %516 = vrot.lane.b32.xlu0 %v499, 126
        %v517 = vpop.permute.xlu0 %516
        %518 = vrot.lane.b32.xlu0 %v500, 126
        %v519 = vpop.permute.xlu0 %518
        %520 = vrot.lane.b32.xlu0 %v501, 126
        %v521 = vpop.permute.xlu0 %520
        %522 = vrot.lane.b32.xlu0 %v502, 126
        %v523 = vpop.permute.xlu0 %522
        %524 = vrot.lane.b32.xlu0 %v503, 126
        %v525 = vpop.permute.xlu0 %524
        %526 = vrot.lane.b32.xlu0 %v504, 126
        %v527 = vpop.permute.xlu0 %526
        %528 = vrot.lane.b32.xlu0 %v505, 126
        %v529 = vpop.permute.xlu0 %528
        %vm530 = vcmask 1031168
        %v531 = vsel %vm530, %v515, %v517
        %v532 = vsel %vm530, %v519, %v521
        %v533 = vsel %vm530, %v523, %v525
        %v534 = vsel %vm530, %v527, %v529
        %v543 = vadd.f32 %v474, %v531
        %v544 = vadd.f32 %v475, %v517
        %v545 = vadd.f32 %v476, %v532
        %v546 = vadd.f32 %v477, %v521
        %v547 = vadd.f32 %v478, %v533
        %v548 = vadd.f32 %v479, %v525
        %v549 = vadd.f32 %v480, %v534
        %v550 = vadd.f32 %v481, %v529
        %v551 = vld [vmem:[%s5] sm:$0xff]
        %v552 = vld [vmem:[%s5 + $0x8] sm:$0xff]
        %v553 = vld [vmem:[%s5 + $0x10] sm:$0xff]
        %v554 = vld [vmem:[%s5 + $0x18] sm:$0xff]
        %556 = vset.pattern.permute.xlu0 0
        %557 = vperm.xlu0 %556, %v551
        %v558 = vpop.permute.xlu0 %557
        %561 = vset.pattern.permute.xlu0 0
        %562 = vperm.xlu0 %561, %v552
        %v563 = vpop.permute.xlu0 %562
        %566 = vset.pattern.permute.xlu0 0
        %567 = vperm.xlu0 %566, %v553
        %v568 = vpop.permute.xlu0 %567
        %571 = vset.pattern.permute.xlu0 0
        %572 = vperm.xlu0 %571, %v554
        %v573 = vpop.permute.xlu0 %572
        %v575 = vadd.f32 %v543, %v558
        %v576 = vadd.f32 %v544, %v558
        %v577 = vadd.f32 %v545, %v563
        %v578 = vadd.f32 %v546, %v563
        %v579 = vadd.f32 %v547, %v568
        %v580 = vadd.f32 %v548, %v568
        %v581 = vadd.f32 %v549, %v573
        %v582 = vadd.f32 %v550, %v573
        %v583 = vmax.f32 %v575, 0.0
        %v584 = vmax.f32 %v576, 0.0
        %v585 = vmax.f32 %v577, 0.0
        %v586 = vmax.f32 %v578, 0.0
        %v587 = vmax.f32 %v579, 0.0
        %v588 = vmax.f32 %v580, 0.0
        %v589 = vmax.f32 %v581, 0.0
        %v590 = vmax.f32 %v582, 0.0
        %v591 = vpack.c.bf16 %v585, %v583
        %v592 = vpack.c.bf16 %v586, %v584
        %v593 = vpack.c.bf16 %v589, %v587
        %v594 = vpack.c.bf16 %v590, %v588
        %v599 = vunpack.c.l.b16 %v591
        %v600 = vunpack.c.l.b16 %v592
        %v601 = vunpack.c.h.b16 %v591
        %v602 = vunpack.c.h.b16 %v592
        %v603 = vunpack.c.l.b16 %v593
        %v604 = vunpack.c.l.b16 %v594
        %v605 = vunpack.c.h.b16 %v593
        %v606 = vunpack.c.h.b16 %v594
        %v607 = vpack.c.b16 %v600, %v599
        %v608 = vpack.c.b16 %v602, %v601
        %v609 = vpack.c.b16 %v604, %v603
        %v610 = vpack.c.b16 %v606, %v605
        %611 = vrot.lane.b32.xlu0 %v607, 1
        %v612 = vpop.permute.xlu0 %611
        %613 = vrot.lane.b32.xlu0 %v608, 1
        %v614 = vpop.permute.xlu0 %613
        %615 = vrot.lane.b32.xlu0 %v609, 1
        %v616 = vpop.permute.xlu0 %615
        %617 = vrot.lane.b32.xlu0 %v610, 1
        %v618 = vpop.permute.xlu0 %617
        %v619 = vrot.slane %v612, 4
        %v620 = vrot.slane %v614, 4
        %v621 = vrot.slane %v616, 4
        %v622 = vrot.slane %v618, 4
        %vm623 = vcmask 7168
        %v624 = vsel %vm623, %v619, %v612
        %v625 = vsel %vm623, %v620, %v614
        %v626 = vsel %vm623, %v621, %v616
        %v627 = vsel %vm623, %v622, %v618
        %vm632 = vcmask 1043472
        %vm633 = vcmask 15364
        %vm634 = vmor %vm633, %vm632
        %635 = vst.msk [vmem:[#allocation3] sm:$0xff] %vm634, %v624
        %636 = vst.msk [vmem:[#allocation3 + $0x8] sm:$0xff] %vm634, %v625
        %637 = vst.msk [vmem:[#allocation3 + $0x10] sm:$0xff] %vm634, %v626
        %638 = vst.msk [vmem:[#allocation3 + $0x18] sm:$0xff] %vm634, %v627
        %v639 = vld [vmem:[#allocation3] sm:$0xff]
        %v640 = vld [vmem:[#allocation3 + $0x8] sm:$0xff]
        %v641 = vld [vmem:[#allocation3 + $0x10] sm:$0xff]
        %v642 = vld [vmem:[#allocation3 + $0x18] sm:$0xff]
        %647 = vrot.lane.b32.xlu0 %v639, 127
        %v648 = vpop.permute.xlu0 %647
        %649 = vrot.lane.b32.xlu0 %v640, 127
        %v650 = vpop.permute.xlu0 %649
        %651 = vrot.lane.b32.xlu0 %v641, 127
        %v652 = vpop.permute.xlu0 %651
        %653 = vrot.lane.b32.xlu0 %v642, 127
        %v654 = vpop.permute.xlu0 %653
        %v655 = vrot.slane %v648, 4
        %v656 = vrot.slane %v650, 4
        %v657 = vrot.slane %v652, 4
        %v658 = vrot.slane %v654, 4
        %vm659 = vcmask 1039360
        %v660 = vsel %vm659, %v648, %v655
        %v661 = vsel %vm659, %v650, %v656
        %v662 = vsel %vm659, %v652, %v657
        %v663 = vsel %vm659, %v654, %v658
        %668 = vst [vmem:[#allocation4] sm:$0xf] %v660
        %669 = vst [vmem:[#allocation4 + $0x4] sm:$0xf] %v661
        %670 = vst [vmem:[#allocation4 + $0x8] sm:$0xf] %v662
        %671 = vst [vmem:[#allocation4 + $0xc] sm:$0xf] %v663
        %v672 = vld [vmem:[#allocation3] sm:$0xff]
        %v673 = vld [vmem:[#allocation3 + $0x8] sm:$0xff]
        %v674 = vld [vmem:[#allocation3 + $0x10] sm:$0xff]
        %v675 = vld [vmem:[#allocation3 + $0x18] sm:$0xff]
        %680 = vrot.lane.b32.xlu0 %v672, 126
        %v681 = vpop.permute.xlu0 %680
        %682 = vrot.lane.b32.xlu0 %v673, 126
        %v683 = vpop.permute.xlu0 %682
        %684 = vrot.lane.b32.xlu0 %v674, 126
        %v685 = vpop.permute.xlu0 %684
        %686 = vrot.lane.b32.xlu0 %v675, 126
        %v687 = vpop.permute.xlu0 %686
        %v688 = vrot.slane %v681, 4
        %v689 = vrot.slane %v683, 4
        %v690 = vrot.slane %v685, 4
        %v691 = vrot.slane %v687, 4
        %vm692 = vcmask 1031168
        %v693 = vsel %vm692, %v681, %v688
        %v694 = vsel %vm692, %v683, %v689
        %v695 = vsel %vm692, %v685, %v690
        %v696 = vsel %vm692, %v687, %v691
        %701 = vst [vmem:[#allocation4 + $0x10] sm:$0xf] %v693
        %702 = vst [vmem:[#allocation4 + $0x14] sm:$0xf] %v694
        %703 = vst [vmem:[#allocation4 + $0x18] sm:$0xf] %v695
        %704 = vst [vmem:[#allocation4 + $0x1c] sm:$0xf] %v696
        %v705 = vld [vmem:[#allocation3] sm:$0xff]
        %v706 = vld [vmem:[#allocation3 + $0x8] sm:$0xff]
        %v707 = vld [vmem:[#allocation3 + $0x10] sm:$0xff]
        %v708 = vld [vmem:[#allocation3 + $0x18] sm:$0xff]
        %713 = vrot.lane.b32.xlu0 %v705, 125
        %v714 = vpop.permute.xlu0 %713
        %715 = vrot.lane.b32.xlu0 %v706, 125
        %v716 = vpop.permute.xlu0 %715
        %717 = vrot.lane.b32.xlu0 %v707, 125
        %v718 = vpop.permute.xlu0 %717
        %719 = vrot.lane.b32.xlu0 %v708, 125
        %v720 = vpop.permute.xlu0 %719
        %v721 = vrot.slane %v714, 4
        %v722 = vrot.slane %v716, 4
        %v723 = vrot.slane %v718, 4
        %v724 = vrot.slane %v720, 4
        %vm725 = vcmask 1022976
        %v726 = vsel %vm725, %v714, %v721
        %v727 = vsel %vm725, %v716, %v722
        %v728 = vsel %vm725, %v718, %v723
        %v729 = vsel %vm725, %v720, %v724
        %734 = vst [vmem:[#allocation4 + $0x20] sm:$0xf] %v726
        %735 = vst [vmem:[#allocation4 + $0x24] sm:$0xf] %v727
        %736 = vst [vmem:[#allocation4 + $0x28] sm:$0xf] %v728
        %737 = vst [vmem:[#allocation4 + $0x2c] sm:$0xf] %v729
        %v738 = vld [vmem:[%s2] sm:$0xf]
        %v739 = vld [vmem:[%s2 + $0x4] sm:$0xf]
        %v740 = vld [vmem:[%s2 + $0x8] sm:$0xf]
        %v741 = vld [vmem:[%s2 + $0xc] sm:$0xf]
        %v742 = vld [vmem:[#allocation4] sm:$0xf]
        %v743 = vld [vmem:[#allocation4 + $0x4] sm:$0xf]
        %v744 = vld [vmem:[#allocation4 + $0x8] sm:$0xf]
        %v745 = vld [vmem:[#allocation4 + $0xc] sm:$0xf]
        %v746 = vld [vmem:[#allocation4 + $0x10] sm:$0xf]
        %v747 = vld [vmem:[#allocation4 + $0x14] sm:$0xf]
        %v748 = vld [vmem:[#allocation4 + $0x18] sm:$0xf]
        %v749 = vld [vmem:[#allocation4 + $0x1c] sm:$0xf]
        %v750 = vld [vmem:[#allocation4 + $0x20] sm:$0xf]
        %v751 = vld [vmem:[#allocation4 + $0x24] sm:$0xf]
        %v752 = vld [vmem:[#allocation4 + $0x28] sm:$0xf]
        %v753 = vld [vmem:[#allocation4 + $0x2c] sm:$0xf]
        %v754 = vld [vmem:[%s6] sm:$0xff]
        %v755 = vld [vmem:[%s6 + $0x8] sm:$0xff]
        %v756 = vld [vmem:[%s6 + $0x10] sm:$0xff]
        %v757 = vld [vmem:[%s6 + $0x18] sm:$0xff]
        %759 = vset.pattern.permute.xlu0 0
        %760 = vperm.xlu0 %759, %v754
        %v761 = vpop.permute.xlu0 %760
        %764 = vset.pattern.permute.xlu0 0
        %765 = vperm.xlu0 %764, %v755
        %v766 = vpop.permute.xlu0 %765
        %769 = vset.pattern.permute.xlu0 0
        %770 = vperm.xlu0 %769, %v756
        %v771 = vpop.permute.xlu0 %770
        %774 = vset.pattern.permute.xlu0 0
        %775 = vperm.xlu0 %774, %v757
        %v776 = vpop.permute.xlu0 %775
        %v782 = vunpack.c.l.b16 %v738
        %v783 = vunpack.c.l.b16 %v739
        %v784 = vunpack.c.l.b16 %v740
        %v785 = vunpack.c.l.b16 %v741
        %v786 = vpack.c.b16 %v783, %v782
        %v787 = vpack.c.b16 %v785, %v784
        %v800 = vunpack.c.l.b16 %v742
        %v801 = vunpack.c.l.b16 %v743
        %v802 = vunpack.c.l.b16 %v744
        %v803 = vunpack.c.l.b16 %v745
        %v804 = vunpack.c.l.b16 %v746
        %v805 = vunpack.c.l.b16 %v747
        %v806 = vunpack.c.l.b16 %v748
        %v807 = vunpack.c.l.b16 %v749
        %v808 = vunpack.c.l.b16 %v750
        %v809 = vunpack.c.l.b16 %v751
        %v810 = vunpack.c.l.b16 %v752
        %v811 = vunpack.c.l.b16 %v753
        %v812 = vpack.c.b16 %v801, %v800
        %v813 = vpack.c.b16 %v803, %v802
        %v814 = vpack.c.b16 %v805, %v804
        %v815 = vpack.c.b16 %v807, %v806
        %v816 = vpack.c.b16 %v809, %v808
        %v817 = vpack.c.b16 %v811, %v810
        %vm824 = vcmask 785408
        %v826 = vsel %vm824, %v786, 0
        %v829 = vsel %vm824, %v787, 0
        %831 = vmatprep.subr.bf16.mxu0 0
        %832 = vmatpush1.bf16.msra.mxu0 0
        %833 = vmatprep.subr.bf16.mxu0 0
        %834 = vmatpush1.bf16.msra.mxu0 0
        %835 = vmatprep.subr.bf16.mxu0 0
        %836 = vmatpush1.bf16.msra.mxu0 %v817
        %837 = vmatprep.subr.bf16.mxu0 0
        %838 = vmatpush1.bf16.msra.mxu0 %v816
        %839 = vmatprep.subr.bf16.mxu0 0
        %840 = vmatpush1.bf16.msra.mxu0 %v815
        %841 = vmatprep.subr.bf16.mxu0 0
        %842 = vmatpush1.bf16.msra.mxu0 %v814
        %843 = vmatprep.subr.bf16.mxu0 0
        %844 = vmatpush1.bf16.msra.mxu0 %v813
        %845 = vmatprep.subr.bf16.mxu0 0
        %846 = vmatpush1.bf16.msra.mxu0 %v812
        %847 = vmatprep.subr.bf16.mxu0 0
        %848 = vmatpush2.bf16.msra.mxu0 0
        %849 = vmatprep.subr.bf16.mxu0 0
        %850 = vmatpush2.bf16.msra.mxu0 0
        %851 = vmatprep.subr.bf16.mxu0 0
        %852 = vmatpush2.bf16.msra.mxu0 0
        %853 = vmatprep.subr.bf16.mxu0 0
        %854 = vmatpush2.bf16.msra.mxu0 0
        %855 = vmatprep.subr.bf16.mxu0 0
        %856 = vmatpush2.bf16.msra.mxu0 0
        %857 = vmatprep.subr.bf16.mxu0 0
        %858 = vmatpush2.bf16.msra.mxu0 0
        %859 = vmatprep.subr.bf16.mxu0 0
        %860 = vmatpush2.bf16.msra.mxu0 0
        %861 = vmatprep.subr.bf16.mxu0 0
        %862 = vmatpush2.bf16.msra.mxu0 0
        %863 = vmatprep.mubr.bf16.mxu0 0
        %864 = vmatmul.mubr.bf16.gmra.mxu0 %v826
        %v865 = vpop.f32.mrf.mxu0
        %v866 = vadd.f32 %v761, %v865
        %v867 = vpop.f32.mrf.mxu0
        %v868 = vpop.f32.mrf.mxu0
        %v869 = vadd.f32 %v766, %v868
        %v870 = vpop.f32.mrf.mxu0
        %871 = vmatprep.mubr.bf16.mxu0 0
        %872 = vmatmul.mubr.bf16.gmra.mxu0 %v829
        %v873 = vpop.f32.mrf.mxu0
        %v874 = vadd.f32 %v771, %v873
        %v875 = vpop.f32.mrf.mxu0
        %v876 = vpop.f32.mrf.mxu0
        %v877 = vadd.f32 %v776, %v876
        %v878 = vpop.f32.mrf.mxu0
        %879 = vdwg.mxu0
        %v880 = vmax.f32 %v866, 0.0
        %v881 = vmax.f32 %v869, 0.0
        %v882 = vmax.f32 %v874, 0.0
        %v883 = vmax.f32 %v877, 0.0
        %v884 = vpack.c.bf16 %v881, %v880
        %v885 = vpack.c.bf16 %v883, %v882
        %v888 = vunpack.c.l.b16 %v884
        %v889 = vunpack.c.h.b16 %v884
        %v890 = vunpack.c.l.b16 %v885
        %v891 = vunpack.c.h.b16 %v885
        %v892 = vpack.c.b16 %v888, %v888
        %v893 = vpack.c.b16 %v889, %v889
        %v894 = vpack.c.b16 %v890, %v890
        %v895 = vpack.c.b16 %v891, %v891
        %896 = vrot.lane.b32.xlu0 %v892, 2
        %v897 = vpop.permute.xlu0 %896
        %898 = vrot.lane.b32.xlu0 %v893, 2
        %v899 = vpop.permute.xlu0 %898
        %900 = vrot.lane.b32.xlu0 %v894, 2
        %v901 = vpop.permute.xlu0 %900
        %902 = vrot.lane.b32.xlu0 %v895, 2
        %v903 = vpop.permute.xlu0 %902
        %v904 = vrot.slane %v897, 4
        %v905 = vrot.slane %v899, 4
        %v906 = vrot.slane %v901, 4
        %v907 = vrot.slane %v903, 4
        %v908 = vsel %vm345, %v904, %v897
        %v909 = vsel %vm345, %v905, %v899
        %v910 = vsel %vm345, %v906, %v901
        %v911 = vsel %vm345, %v907, %v903
        %916 = vst.msk [vmem:[#allocation2] sm:$0xff] %vm634, %v908
        %917 = vst.msk [vmem:[#allocation2 + $0x8] sm:$0xff] %vm634, %v909
        %918 = vst.msk [vmem:[#allocation2 + $0x10] sm:$0xff] %vm634, %v910
        %919 = vst.msk [vmem:[#allocation2 + $0x18] sm:$0xff] %vm634, %v911
        %v920 = vld [vmem:[#allocation2] sm:$0xf]
        %v921 = vld [vmem:[#allocation2 + $0x8] sm:$0xf]
        %v922 = vld [vmem:[#allocation2 + $0x10] sm:$0xf]
        %v923 = vld [vmem:[#allocation2 + $0x18] sm:$0xf]
        %924 = vst [vmem:[#allocation4] sm:$0xf] %v920
        %925 = vst [vmem:[#allocation4 + $0x4] sm:$0xf] %v921
        %926 = vst [vmem:[#allocation4 + $0x8] sm:$0xf] %v922
        %927 = vst [vmem:[#allocation4 + $0xc] sm:$0xf] %v923
        %v928 = vld [vmem:[#allocation2] sm:$0xff]
        %v929 = vld [vmem:[#allocation2 + $0x8] sm:$0xff]
        %v930 = vld [vmem:[#allocation2 + $0x10] sm:$0xff]
        %v931 = vld [vmem:[#allocation2 + $0x18] sm:$0xff]
        %936 = vrot.lane.b32.xlu0 %v928, 127
        %v937 = vpop.permute.xlu0 %936
        %938 = vrot.lane.b32.xlu0 %v929, 127
        %v939 = vpop.permute.xlu0 %938
        %940 = vrot.lane.b32.xlu0 %v930, 127
        %v941 = vpop.permute.xlu0 %940
        %942 = vrot.lane.b32.xlu0 %v931, 127
        %v943 = vpop.permute.xlu0 %942
        %v944 = vrot.slane %v937, 4
        %v945 = vrot.slane %v939, 4
        %v946 = vrot.slane %v941, 4
        %v947 = vrot.slane %v943, 4
        %v948 = vsel %vm659, %v937, %v944
        %v949 = vsel %vm659, %v939, %v945
        %v950 = vsel %vm659, %v941, %v946
        %v951 = vsel %vm659, %v943, %v947
        %956 = vst [vmem:[#allocation4 + $0x10] sm:$0xf] %v948
        %957 = vst [vmem:[#allocation4 + $0x14] sm:$0xf] %v949
        %958 = vst [vmem:[#allocation4 + $0x18] sm:$0xf] %v950
        %959 = vst [vmem:[#allocation4 + $0x1c] sm:$0xf] %v951
        %v960 = vld [vmem:[#allocation2] sm:$0xff]
        %v961 = vld [vmem:[#allocation2 + $0x8] sm:$0xff]
        %v962 = vld [vmem:[#allocation2 + $0x10] sm:$0xff]
        %v963 = vld [vmem:[#allocation2 + $0x18] sm:$0xff]
        %968 = vrot.lane.b32.xlu0 %v960, 126
        %v969 = vpop.permute.xlu0 %968
        %970 = vrot.lane.b32.xlu0 %v961, 126
        %v971 = vpop.permute.xlu0 %970
        %972 = vrot.lane.b32.xlu0 %v962, 126
        %v973 = vpop.permute.xlu0 %972
        %974 = vrot.lane.b32.xlu0 %v963, 126
        %v975 = vpop.permute.xlu0 %974
        %v976 = vrot.slane %v969, 4
        %v977 = vrot.slane %v971, 4
        %v978 = vrot.slane %v973, 4
        %v979 = vrot.slane %v975, 4
        %v980 = vsel %vm692, %v969, %v976
        %v981 = vsel %vm692, %v971, %v977
        %v982 = vsel %vm692, %v973, %v978
        %v983 = vsel %vm692, %v975, %v979
        %988 = vst [vmem:[#allocation4 + $0x20] sm:$0xf] %v980
        %989 = vst [vmem:[#allocation4 + $0x24] sm:$0xf] %v981
        %990 = vst [vmem:[#allocation4 + $0x28] sm:$0xf] %v982
        %991 = vst [vmem:[#allocation4 + $0x2c] sm:$0xf] %v983
        %v992 = vld [vmem:[#allocation2] sm:$0xff]
        %v993 = vld [vmem:[#allocation2 + $0x8] sm:$0xff]
        %v994 = vld [vmem:[#allocation2 + $0x10] sm:$0xff]
        %v995 = vld [vmem:[#allocation2 + $0x18] sm:$0xff]
        %1000 = vrot.lane.b32.xlu0 %v992, 125
        %v1001 = vpop.permute.xlu0 %1000
        %1002 = vrot.lane.b32.xlu0 %v993, 125
        %v1003 = vpop.permute.xlu0 %1002
        %1004 = vrot.lane.b32.xlu0 %v994, 125
        %v1005 = vpop.permute.xlu0 %1004
        %1006 = vrot.lane.b32.xlu0 %v995, 125
        %v1007 = vpop.permute.xlu0 %1006
        %v1008 = vrot.slane %v1001, 4
        %v1009 = vrot.slane %v1003, 4
        %v1010 = vrot.slane %v1005, 4
        %v1011 = vrot.slane %v1007, 4
        %v1012 = vsel %vm725, %v1001, %v1008
        %v1013 = vsel %vm725, %v1003, %v1009
        %v1014 = vsel %vm725, %v1005, %v1010
        %v1015 = vsel %vm725, %v1007, %v1011
        %1020 = vst [vmem:[#allocation4 + $0x30] sm:$0xf] %v1012
        %1021 = vst [vmem:[#allocation4 + $0x34] sm:$0xf] %v1013
        %1022 = vst [vmem:[#allocation4 + $0x38] sm:$0xf] %v1014
        %1023 = vst [vmem:[#allocation4 + $0x3c] sm:$0xf] %v1015
        %v1024 = vld [vmem:[#allocation2] sm:$0xff]
        %v1025 = vld [vmem:[#allocation2 + $0x8] sm:$0xff]
        %v1026 = vld [vmem:[#allocation2 + $0x10] sm:$0xff]
        %v1027 = vld [vmem:[#allocation2 + $0x18] sm:$0xff]
        %1032 = vrot.lane.b32.xlu0 %v1024, 124
        %v1033 = vpop.permute.xlu0 %1032
        %1034 = vrot.lane.b32.xlu0 %v1025, 124
        %v1035 = vpop.permute.xlu0 %1034
        %1036 = vrot.lane.b32.xlu0 %v1026, 124
        %v1037 = vpop.permute.xlu0 %1036
        %1038 = vrot.lane.b32.xlu0 %v1027, 124
        %v1039 = vpop.permute.xlu0 %1038
        %v1040 = vrot.slane %v1033, 4
        %v1041 = vrot.slane %v1035, 4
        %v1042 = vrot.slane %v1037, 4
        %v1043 = vrot.slane %v1039, 4
        %vm1044 = vcmask 1014784
        %v1045 = vsel %vm1044, %v1033, %v1040
        %v1046 = vsel %vm1044, %v1035, %v1041
        %v1047 = vsel %vm1044, %v1037, %v1042
        %v1048 = vsel %vm1044, %v1039, %v1043
        %1053 = vst [vmem:[#allocation4 + $0x40] sm:$0xf] %v1045
        %1054 = vst [vmem:[#allocation4 + $0x44] sm:$0xf] %v1046
        %1055 = vst [vmem:[#allocation4 + $0x48] sm:$0xf] %v1047
        %1056 = vst [vmem:[#allocation4 + $0x4c] sm:$0xf] %v1048
        %v1057 = vld [vmem:[%s3] sm:$0xff]
        %v1058 = vld [vmem:[%s3 + $0x8] sm:$0xff]
        %v1059 = vld [vmem:[%s3 + $0x10] sm:$0xff]
        %v1060 = vld [vmem:[%s3 + $0x18] sm:$0xff]
        %v1061 = vld [vmem:[#allocation4] sm:$0xf]
        %v1062 = vld [vmem:[#allocation4 + $0x4] sm:$0xf]
        %v1063 = vld [vmem:[#allocation4 + $0x8] sm:$0xf]
        %v1064 = vld [vmem:[#allocation4 + $0xc] sm:$0xf]
        %v1065 = vld [vmem:[#allocation4 + $0x10] sm:$0xf]
        %v1066 = vld [vmem:[#allocation4 + $0x14] sm:$0xf]
        %v1067 = vld [vmem:[#allocation4 + $0x18] sm:$0xf]
        %v1068 = vld [vmem:[#allocation4 + $0x1c] sm:$0xf]
        %v1069 = vld [vmem:[#allocation4 + $0x20] sm:$0xf]
        %v1070 = vld [vmem:[#allocation4 + $0x24] sm:$0xf]
        %v1071 = vld [vmem:[#allocation4 + $0x28] sm:$0xf]
        %v1072 = vld [vmem:[#allocation4 + $0x2c] sm:$0xf]
        %v1073 = vld [vmem:[#allocation4 + $0x30] sm:$0xf]
        %v1074 = vld [vmem:[#allocation4 + $0x34] sm:$0xf]
        %v1075 = vld [vmem:[#allocation4 + $0x38] sm:$0xf]
        %v1076 = vld [vmem:[#allocation4 + $0x3c] sm:$0xf]
        %v1077 = vld [vmem:[#allocation4 + $0x40] sm:$0xf]
        %v1078 = vld [vmem:[#allocation4 + $0x44] sm:$0xf]
        %v1079 = vld [vmem:[#allocation4 + $0x48] sm:$0xf]
        %v1080 = vld [vmem:[#allocation4 + $0x4c] sm:$0xf]
        %v1081 = vld [vmem:[%s7] sm:$0xff]
        %v1082 = vld [vmem:[%s7 + $0x8] sm:$0xff]
        %v1083 = vld [vmem:[%s7 + $0x10] sm:$0xff]
        %v1084 = vld [vmem:[%s7 + $0x18] sm:$0xff]
        %1086 = vset.pattern.permute.xlu0 0
        %1087 = vperm.xlu0 %1086, %v1081
        %v1088 = vpop.permute.xlu0 %1087
        %1091 = vset.pattern.permute.xlu0 0
        %1092 = vperm.xlu0 %1091, %v1082
        %v1093 = vpop.permute.xlu0 %1092
        %1096 = vset.pattern.permute.xlu0 0
        %1097 = vperm.xlu0 %1096, %v1083
        %v1098 = vpop.permute.xlu0 %1097
        %1101 = vset.pattern.permute.xlu0 0
        %1102 = vperm.xlu0 %1101, %v1084
        %v1103 = vpop.permute.xlu0 %1102
        %v1109 = vunpack.c.l.b16 %v1057
        %v1110 = vunpack.c.h.b16 %v1057
        %v1111 = vunpack.c.l.b16 %v1058
        %v1112 = vunpack.c.h.b16 %v1058
        %v1113 = vunpack.c.l.b16 %v1059
        %v1114 = vunpack.c.h.b16 %v1059
        %v1115 = vunpack.c.l.b16 %v1060
        %v1116 = vunpack.c.h.b16 %v1060
        %v1117 = vpack.c.b16 %v1111, %v1109
        %v1118 = vpack.c.b16 %v1112, %v1110
        %v1119 = vpack.c.b16 %v1115, %v1113
        %v1120 = vpack.c.b16 %v1116, %v1114
        %v1143 = vunpack.c.l.b16 %v1061
        %v1144 = vunpack.c.l.b16 %v1062
        %v1145 = vunpack.c.l.b16 %v1063
        %v1146 = vunpack.c.l.b16 %v1064
        %v1147 = vunpack.c.l.b16 %v1065
        %v1148 = vunpack.c.l.b16 %v1066
        %v1149 = vunpack.c.l.b16 %v1067
        %v1150 = vunpack.c.l.b16 %v1068
        %v1151 = vunpack.c.l.b16 %v1069
        %v1152 = vunpack.c.l.b16 %v1070
        %v1153 = vunpack.c.l.b16 %v1071
        %v1154 = vunpack.c.l.b16 %v1072
        %v1155 = vunpack.c.l.b16 %v1073
        %v1156 = vunpack.c.l.b16 %v1074
        %v1157 = vunpack.c.l.b16 %v1075
        %v1158 = vunpack.c.l.b16 %v1076
        %v1159 = vunpack.c.l.b16 %v1077
        %v1160 = vunpack.c.l.b16 %v1078
        %v1161 = vunpack.c.l.b16 %v1079
        %v1162 = vunpack.c.l.b16 %v1080
        %v1163 = vpack.c.b16 %v1144, %v1143
        %v1164 = vpack.c.b16 %v1146, %v1145
        %v1165 = vpack.c.b16 %v1148, %v1147
        %v1166 = vpack.c.b16 %v1150, %v1149
        %v1167 = vpack.c.b16 %v1152, %v1151
        %v1168 = vpack.c.b16 %v1154, %v1153
        %v1169 = vpack.c.b16 %v1156, %v1155
        %v1170 = vpack.c.b16 %v1158, %v1157
        %v1171 = vpack.c.b16 %v1160, %v1159
        %v1172 = vpack.c.b16 %v1162, %v1161
        %vm1183 = vcmask 261120
        %v1185 = vsel %vm1183, %v1118, 0
        %v1188 = vsel %vm1183, %v1120, 0
        %1190 = vmatprep.subr.bf16.mxu0 0
        %1191 = vmatpush1.bf16.msra.mxu0 %v1170
        %1192 = vmatprep.subr.bf16.mxu0 0
        %1193 = vmatpush1.bf16.msra.mxu0 %v1169
        %1194 = vmatprep.subr.bf16.mxu0 0
        %1195 = vmatpush1.bf16.msra.mxu0 %v1168
        %1196 = vmatprep.subr.bf16.mxu0 0
        %1197 = vmatpush1.bf16.msra.mxu0 %v1167
        %1198 = vmatprep.subr.bf16.mxu0 0
        %1199 = vmatpush1.bf16.msra.mxu0 %v1166
        %1200 = vmatprep.subr.bf16.mxu0 0
        %1201 = vmatpush1.bf16.msra.mxu0 %v1165
        %1202 = vmatprep.subr.bf16.mxu0 0
        %1203 = vmatpush1.bf16.msra.mxu0 %v1164
        %1204 = vmatprep.subr.bf16.mxu0 0
        %1205 = vmatpush1.bf16.msra.mxu0 %v1163
        %1206 = vmatprep.subr.bf16.mxu0 0
        %1207 = vmatpush2.bf16.msra.mxu0 0
        %1208 = vmatprep.subr.bf16.mxu0 0
        %1209 = vmatpush2.bf16.msra.mxu0 0
        %1210 = vmatprep.subr.bf16.mxu0 0
        %1211 = vmatpush2.bf16.msra.mxu0 0
        %1212 = vmatprep.subr.bf16.mxu0 0
        %1213 = vmatpush2.bf16.msra.mxu0 0
        %1214 = vmatprep.subr.bf16.mxu0 0
        %1215 = vmatpush2.bf16.msra.mxu0 0
        %1216 = vmatprep.subr.bf16.mxu0 0
        %1217 = vmatpush2.bf16.msra.mxu0 0
        %1218 = vmatprep.subr.bf16.mxu0 0
        %1219 = vmatpush2.bf16.msra.mxu0 %v1172
        %1220 = vmatprep.subr.bf16.mxu0 0
        %1221 = vmatpush2.bf16.msra.mxu0 %v1171
        %1222 = vmatprep.mubr.bf16.mxu0 %v1185
        %1223 = vmatmul.mubr.bf16.gmra.mxu0 %v1117
        %v1224 = vpop.f32.mrf.mxu0
        %v1225 = vadd.f32 %v1088, %v1224
        %v1226 = vpop.f32.mrf.mxu0
        %v1227 = vpop.f32.mrf.mxu0
        %v1228 = vadd.f32 %v1093, %v1227
        %v1229 = vpop.f32.mrf.mxu0
        %1230 = vmatprep.mubr.bf16.mxu0 %v1188
        %1231 = vmatmul.mubr.bf16.gmra.mxu0 %v1119
        %v1232 = vpop.f32.mrf.mxu0
        %v1233 = vadd.f32 %v1098, %v1232
        %v1234 = vpop.f32.mrf.mxu0
        %v1235 = vpop.f32.mrf.mxu0
        %v1236 = vadd.f32 %v1103, %v1235
        %v1237 = vpop.f32.mrf.mxu0
        %1238 = vdwg.mxu0
        %v1239 = vmax.f32 %v1225, 0.0
        %v1240 = vmax.f32 %v1228, 0.0
        %v1241 = vmax.f32 %v1233, 0.0
        %v1242 = vmax.f32 %v1236, 0.0
        %v1243 = vpack.c.bf16 %v1240, %v1239
        %v1244 = vpack.c.bf16 %v1242, %v1241
        %v1247 = vunpack.c.l.b16 %v1243
        %v1248 = vunpack.c.h.b16 %v1243
        %v1249 = vunpack.c.l.b16 %v1244
        %v1250 = vunpack.c.h.b16 %v1244
        %v1251 = vpack.c.b16 %v1247, %v1247
        %v1252 = vpack.c.b16 %v1248, %v1248
        %v1253 = vpack.c.b16 %v1249, %v1249
        %v1254 = vpack.c.b16 %v1250, %v1250
        %1255 = vrot.lane.b32.xlu0 %v1251, 2
        %v1256 = vpop.permute.xlu0 %1255
        %1257 = vrot.lane.b32.xlu0 %v1252, 2
        %v1258 = vpop.permute.xlu0 %1257
        %1259 = vrot.lane.b32.xlu0 %v1253, 2
        %v1260 = vpop.permute.xlu0 %1259
        %1261 = vrot.lane.b32.xlu0 %v1254, 2
        %v1262 = vpop.permute.xlu0 %1261
        %v1263 = vrot.slane %v1256, 4
        %v1264 = vrot.slane %v1258, 4
        %v1265 = vrot.slane %v1260, 4
        %v1266 = vrot.slane %v1262, 4
        %v1267 = vsel %vm345, %v1263, %v1256
        %v1268 = vsel %vm345, %v1264, %v1258
        %v1269 = vsel %vm345, %v1265, %v1260
        %v1270 = vsel %vm345, %v1266, %v1262
        %1275 = vst.msk [vmem:[#allocation3] sm:$0xff] %vm634, %v1267
        %1276 = vst.msk [vmem:[#allocation3 + $0x8] sm:$0xff] %vm634, %v1268
        %1277 = vst.msk [vmem:[#allocation3 + $0x10] sm:$0xff] %vm634, %v1269
        %1278 = vst.msk [vmem:[#allocation3 + $0x18] sm:$0xff] %vm634, %v1270
        %v1279 = vld [vmem:[#allocation3] sm:$0xff]
        %v1280 = vld [vmem:[#allocation3 + $0x8] sm:$0xff]
        %v1281 = vld [vmem:[#allocation3 + $0x10] sm:$0xff]
        %v1282 = vld [vmem:[#allocation3 + $0x18] sm:$0xff]
        %1287 = vrot.lane.b32.xlu0 %v1279, 127
        %v1288 = vpop.permute.xlu0 %1287
        %1289 = vrot.lane.b32.xlu0 %v1280, 127
        %v1290 = vpop.permute.xlu0 %1289
        %1291 = vrot.lane.b32.xlu0 %v1281, 127
        %v1292 = vpop.permute.xlu0 %1291
        %1293 = vrot.lane.b32.xlu0 %v1282, 127
        %v1294 = vpop.permute.xlu0 %1293
        %v1295 = vrot.slane %v1288, 4
        %v1296 = vrot.slane %v1290, 4
        %v1297 = vrot.slane %v1292, 4
        %v1298 = vrot.slane %v1294, 4
        %v1299 = vsel %vm659, %v1288, %v1295
        %v1300 = vsel %vm659, %v1290, %v1296
        %v1301 = vsel %vm659, %v1292, %v1297
        %v1302 = vsel %vm659, %v1294, %v1298
        %1307 = vst [vmem:[#allocation4] sm:$0xf] %v1299
        %1308 = vst [vmem:[#allocation4 + $0x4] sm:$0xf] %v1300
        %1309 = vst [vmem:[#allocation4 + $0x8] sm:$0xf] %v1301
        %1310 = vst [vmem:[#allocation4 + $0xc] sm:$0xf] %v1302
        %v1311 = vld [vmem:[#allocation3] sm:$0xff]
        %v1312 = vld [vmem:[#allocation3 + $0x8] sm:$0xff]
        %v1313 = vld [vmem:[#allocation3 + $0x10] sm:$0xff]
        %v1314 = vld [vmem:[#allocation3 + $0x18] sm:$0xff]
        %1319 = vrot.lane.b32.xlu0 %v1311, 126
        %v1320 = vpop.permute.xlu0 %1319
        %1321 = vrot.lane.b32.xlu0 %v1312, 126
        %v1322 = vpop.permute.xlu0 %1321
        %1323 = vrot.lane.b32.xlu0 %v1313, 126
        %v1324 = vpop.permute.xlu0 %1323
        %1325 = vrot.lane.b32.xlu0 %v1314, 126
        %v1326 = vpop.permute.xlu0 %1325
        %v1327 = vrot.slane %v1320, 4
        %v1328 = vrot.slane %v1322, 4
        %v1329 = vrot.slane %v1324, 4
        %v1330 = vrot.slane %v1326, 4
        %v1331 = vsel %vm692, %v1320, %v1327
        %v1332 = vsel %vm692, %v1322, %v1328
        %v1333 = vsel %vm692, %v1324, %v1329
        %v1334 = vsel %vm692, %v1326, %v1330
        %1339 = vst [vmem:[#allocation4 + $0x10] sm:$0xf] %v1331
        %1340 = vst [vmem:[#allocation4 + $0x14] sm:$0xf] %v1332
        %1341 = vst [vmem:[#allocation4 + $0x18] sm:$0xf] %v1333
        %1342 = vst [vmem:[#allocation4 + $0x1c] sm:$0xf] %v1334
        %v1343 = vld [vmem:[#allocation3] sm:$0xff]
        %v1344 = vld [vmem:[#allocation3 + $0x8] sm:$0xff]
        %v1345 = vld [vmem:[#allocation3 + $0x10] sm:$0xff]
        %v1346 = vld [vmem:[#allocation3 + $0x18] sm:$0xff]
        %1351 = vrot.lane.b32.xlu0 %v1343, 125
        %v1352 = vpop.permute.xlu0 %1351
        %1353 = vrot.lane.b32.xlu0 %v1344, 125
        %v1354 = vpop.permute.xlu0 %1353
        %1355 = vrot.lane.b32.xlu0 %v1345, 125
        %v1356 = vpop.permute.xlu0 %1355
        %1357 = vrot.lane.b32.xlu0 %v1346, 125
        %v1358 = vpop.permute.xlu0 %1357
        %v1359 = vrot.slane %v1352, 4
        %v1360 = vrot.slane %v1354, 4
        %v1361 = vrot.slane %v1356, 4
        %v1362 = vrot.slane %v1358, 4
        %v1363 = vsel %vm725, %v1352, %v1359
        %v1364 = vsel %vm725, %v1354, %v1360
        %v1365 = vsel %vm725, %v1356, %v1361
        %v1366 = vsel %vm725, %v1358, %v1362
        %1371 = vst [vmem:[#allocation4 + $0x20] sm:$0xf] %v1363
        %1372 = vst [vmem:[#allocation4 + $0x24] sm:$0xf] %v1364
        %1373 = vst [vmem:[#allocation4 + $0x28] sm:$0xf] %v1365
        %1374 = vst [vmem:[#allocation4 + $0x2c] sm:$0xf] %v1366
        %v1375 = vld [vmem:[%s4] sm:$0xf]
        %v1376 = vld [vmem:[%s4 + $0x4] sm:$0xf]
        %v1377 = vld [vmem:[%s4 + $0x8] sm:$0xf]
        %v1378 = vld [vmem:[%s4 + $0xc] sm:$0xf]
        %v1379 = vld [vmem:[#allocation4] sm:$0xf]
        %v1380 = vld [vmem:[#allocation4 + $0x4] sm:$0xf]
        %v1381 = vld [vmem:[#allocation4 + $0x8] sm:$0xf]
        %v1382 = vld [vmem:[#allocation4 + $0xc] sm:$0xf]
        %v1383 = vld [vmem:[#allocation4 + $0x10] sm:$0xf]
        %v1384 = vld [vmem:[#allocation4 + $0x14] sm:$0xf]
        %v1385 = vld [vmem:[#allocation4 + $0x18] sm:$0xf]
        %v1386 = vld [vmem:[#allocation4 + $0x1c] sm:$0xf]
        %v1387 = vld [vmem:[#allocation4 + $0x20] sm:$0xf]
        %v1388 = vld [vmem:[#allocation4 + $0x24] sm:$0xf]
        %v1389 = vld [vmem:[#allocation4 + $0x28] sm:$0xf]
        %v1390 = vld [vmem:[#allocation4 + $0x2c] sm:$0xf]
        %v1391 = vld [vmem:[%s8] sm:$0xff]
        %v1392 = vld [vmem:[%s8 + $0x8] sm:$0xff]
        %v1393 = vld [vmem:[%s8 + $0x10] sm:$0xff]
        %v1394 = vld [vmem:[%s8 + $0x18] sm:$0xff]
        %1396 = vset.pattern.permute.xlu0 0
        %1397 = vperm.xlu0 %1396, %v1391
        %v1398 = vpop.permute.xlu0 %1397
        %1401 = vset.pattern.permute.xlu0 0
        %1402 = vperm.xlu0 %1401, %v1392
        %v1403 = vpop.permute.xlu0 %1402
        %1406 = vset.pattern.permute.xlu0 0
        %1407 = vperm.xlu0 %1406, %v1393
        %v1408 = vpop.permute.xlu0 %1407
        %1411 = vset.pattern.permute.xlu0 0
        %1412 = vperm.xlu0 %1411, %v1394
        %v1413 = vpop.permute.xlu0 %1412
        %v1419 = vunpack.c.l.b16 %v1375
        %v1420 = vunpack.c.l.b16 %v1376
        %v1421 = vunpack.c.l.b16 %v1377
        %v1422 = vunpack.c.l.b16 %v1378
        %v1423 = vpack.c.b16 %v1420, %v1419
        %v1424 = vpack.c.b16 %v1422, %v1421
        %v1437 = vunpack.c.l.b16 %v1379
        %v1438 = vunpack.c.l.b16 %v1380
        %v1439 = vunpack.c.l.b16 %v1381
        %v1440 = vunpack.c.l.b16 %v1382
        %v1441 = vunpack.c.l.b16 %v1383
        %v1442 = vunpack.c.l.b16 %v1384
        %v1443 = vunpack.c.l.b16 %v1385
        %v1444 = vunpack.c.l.b16 %v1386
        %v1445 = vunpack.c.l.b16 %v1387
        %v1446 = vunpack.c.l.b16 %v1388
        %v1447 = vunpack.c.l.b16 %v1389
        %v1448 = vunpack.c.l.b16 %v1390
        %v1449 = vpack.c.b16 %v1438, %v1437
        %v1450 = vpack.c.b16 %v1440, %v1439
        %v1451 = vpack.c.b16 %v1442, %v1441
        %v1452 = vpack.c.b16 %v1444, %v1443
        %v1453 = vpack.c.b16 %v1446, %v1445
        %v1454 = vpack.c.b16 %v1448, %v1447
        %v1462 = vsel %vm824, %v1423, 0
        %v1465 = vsel %vm824, %v1424, 0
        %1467 = vmatprep.subr.bf16.mxu0 0
        %1468 = vmatpush1.bf16.msra.mxu0 0
        %1469 = vmatprep.subr.bf16.mxu0 0
        %1470 = vmatpush1.bf16.msra.mxu0 0
        %1471 = vmatprep.subr.bf16.mxu0 0
        %1472 = vmatpush1.bf16.msra.mxu0 %v1454
        %1473 = vmatprep.subr.bf16.mxu0 0
        %1474 = vmatpush1.bf16.msra.mxu0 %v1453
        %1475 = vmatprep.subr.bf16.mxu0 0
        %1476 = vmatpush1.bf16.msra.mxu0 %v1452
        %1477 = vmatprep.subr.bf16.mxu0 0
        %1478 = vmatpush1.bf16.msra.mxu0 %v1451
        %1479 = vmatprep.subr.bf16.mxu0 0
        %1480 = vmatpush1.bf16.msra.mxu0 %v1450
        %1481 = vmatprep.subr.bf16.mxu0 0
        %1482 = vmatpush1.bf16.msra.mxu0 %v1449
        %1483 = vmatprep.subr.bf16.mxu0 0
        %1484 = vmatpush2.bf16.msra.mxu0 0
        %1485 = vmatprep.subr.bf16.mxu0 0
        %1486 = vmatpush2.bf16.msra.mxu0 0
        %1487 = vmatprep.subr.bf16.mxu0 0
        %1488 = vmatpush2.bf16.msra.mxu0 0
        %1489 = vmatprep.subr.bf16.mxu0 0
        %1490 = vmatpush2.bf16.msra.mxu0 0
        %1491 = vmatprep.subr.bf16.mxu0 0
        %1492 = vmatpush2.bf16.msra.mxu0 0
        %1493 = vmatprep.subr.bf16.mxu0 0
        %1494 = vmatpush2.bf16.msra.mxu0 0
        %1495 = vmatprep.subr.bf16.mxu0 0
        %1496 = vmatpush2.bf16.msra.mxu0 0
        %1497 = vmatprep.subr.bf16.mxu0 0
        %1498 = vmatpush2.bf16.msra.mxu0 0
        %1499 = vmatprep.mubr.bf16.mxu0 0
        %1500 = vmatmul.mubr.bf16.gmra.mxu0 %v1462
        %v1501 = vpop.f32.mrf.mxu0
        %v1502 = vadd.f32 %v1398, %v1501
        %v1503 = vpop.f32.mrf.mxu0
        %v1504 = vpop.f32.mrf.mxu0
        %v1505 = vadd.f32 %v1403, %v1504
        %v1506 = vpop.f32.mrf.mxu0
        %1507 = vmatprep.mubr.bf16.mxu0 0
        %1508 = vmatmul.mubr.bf16.gmra.mxu0 %v1465
        %v1509 = vpop.f32.mrf.mxu0
        %v1510 = vadd.f32 %v1408, %v1509
        %v1511 = vpop.f32.mrf.mxu0
        %v1512 = vpop.f32.mrf.mxu0
        %v1513 = vadd.f32 %v1413, %v1512
        %v1514 = vpop.f32.mrf.mxu0
        %1515 = vdwg.mxu0
        %v1516 = vmax.f32 %v1502, 0.0
        %v1517 = vmax.f32 %v1505, 0.0
        %v1518 = vmax.f32 %v1510, 0.0
        %v1519 = vmax.f32 %v1513, 0.0
        %1520 = vst [vmem:[%s321] sm:$0xff] %v1516
        %1521 = vst [vmem:[%s321 + $0x8] sm:$0xff] %v1517
        %1522 = vst [vmem:[%s321 + $0x10] sm:$0xff] %v1518
        %1523 = vst [vmem:[%s321 + $0x18] sm:$0xff] %v1519
        %s1524 = sand.u32 %s225, 1
        %s1525 = scalar_lea.sflag [#allocation6], %s1524
        %s1526 = sand.u32 %s225, 1
        %s1527 = smul.addr %s1526, 32
        %s1528 = scalar_lea.vmem [#allocation5], %s1527
        // Predicated region
        $region57: #{tpu_custom_call.1} parent=55 // pred_check
          %p1529 = pneg %p235
        $region58: #{tpu_custom_call.1} parent=55 // pred_check_branch
          %1531 = sbr.rel (%p1529) target = $region60
        $region59: #{tpu_custom_call.1} parent=55 // pred_region
          %s1533 = ssub.s32 512, 512
          %1534 = vsyncadd %s1525, %s1533
          %s1535 = smul.addr %s23, 4
          %s1536 = smul.addr %s1535, 128
          %s1537 = scalar_lea.hbm %s9, %s1536
          %s1538 = sshll.u32 %s1528, 4
          %s1539 = int_to_ptr.vmem [resolvable:$true] %s1538
          %1544 = dma.vmem_to_hbm [thread:$0]  %s1539, 512, %s1537, %s1525, 128, 128, 8
        $region60: #{tpu_custom_call.1} parent=55 // pred_fallthru
          _
      $region56: #{tpu_custom_call.1} parent=5 // pred_fallthru
        _
      %p1545 = scmp.le.s32.totalorder 2, %s18
      // Predicated region
      $region61: #{tpu_custom_call.1} parent=5 // pred_check
        %p1546 = pneg %p1545
      $region62: #{tpu_custom_call.1} parent=5 // pred_check_branch
        %1548 = sbr.rel (%p1546) target = $region64
      $region63: #{tpu_custom_call.1} parent=5 // pred_region
        %s1549 = ssub.s32 %s18, 2
        // Predicated region
        $region65: #{tpu_custom_call.1} parent=63 // pred_check
          %p1550 = pneg %p241
        $region66: #{tpu_custom_call.1} parent=63 // pred_check_branch
          %1552 = sbr.rel (%p1550) target = $region68
        $region67: #{tpu_custom_call.1} parent=63 // pred_region
          %s1553 = sand.u32 %s226, 1
          %s1554 = scalar_lea.sflag [#allocation6], %s1553
          %s1555 = sand.u32 %s226, 1
          %s1556 = smul.addr %s1555, 32
          %s1557 = scalar_lea.vmem [#allocation5], %s1556
          %1558 = dma.done %s1554, 512
        $region68: #{tpu_custom_call.1} parent=63 // pred_fallthru
          _
      $region64: #{tpu_custom_call.1} parent=5 // pred_fallthru
        _
    $region6: #{tpu_custom_call.1} parent=1 // loop_footer
      %s22 = sadd.s32 1, %s18
    $region7: #{tpu_custom_call.1} parent=1 // loop_footer_branch
      %17 = sbr.rel target = $region3
    $region8: #{tpu_custom_call.1} parent=1 // loop_exit
      _
    %1559 = vsyncpa [#allocation6], 1
    %s1560 = scalar_lea.sflag [#allocation6], 1
    %1561 = vsyncpa %s1560, 1

</llo_original>
